<compile_context>
chip_gen: v5e
topology: v5e:2x2
jax: 0.10.0
libtpu: 0.0.40
codegen_flags: <defaults>
</compile_context>

<pallas_src>
import functools

import jax
import jax.numpy as jnp
from jax.experimental import pallas as pl
from jax.experimental.pallas import tpu as pltpu


def _cdiv(a, b):
    return (a + b - 1) // b


def _round_up(a, b):
    return _cdiv(a, b) * b


# ---------------------------------------------------------------------------
# Schedule (linear), mirroring make_beta_schedule('linear', ...) + buffers
# from DDPM_Sampler.__init__ (plain JAX -- pure parameter setup).
# ---------------------------------------------------------------------------
def make_ddpm_buffers(T, beta_1, beta_T):
    betas = jnp.linspace(beta_1, beta_T, T, dtype=jnp.float32)
    alphas = 1.0 - betas
    alphas_bar = jnp.cumprod(alphas)
    alphas_bar_prev = jnp.concatenate([jnp.ones((1,), jnp.float32), alphas_bar[:-1]])
    posterior_variance = betas * (1.0 - alphas_bar_prev) / (1.0 - alphas_bar)
    coeff1 = jnp.sqrt(1.0 / alphas)
    coeff2 = coeff1 * (1.0 - alphas) / jnp.sqrt(1.0 - alphas_bar)
    post_log_var = jnp.log(jnp.maximum(posterior_variance, 1e-20))
    sigma = jnp.exp(0.5 * post_log_var)        # precomputed -> no per-step exp
    return coeff1, coeff2, sigma


def make_time_bias_table(T, C):
    # Deterministic synthetic time embedding -> per-(t, channel) bias of the
    # synthetic eps model.
    t = jnp.arange(T, dtype=jnp.float32)[:, None]
    c = jnp.arange(C, dtype=jnp.float32)[None, :]
    return 0.1 * jnp.sin((t + 1.0) * (c + 1.0) / T)          # (T, C)


def make_folded_tables(coeff1, coeff2, wx, bias_tbl):
    """Fold per-step scalars into effective weights (review item).

    mean[c] = c1[t]*x[c] - c2[t]*eps[c]
            = sum_k A[t,k,c]*x[k] + (-c2[t])*cmix[c] + (-c2[t]*bias[t,c])
    with A[t,k,c] = c1[t]*delta(k,c) - c2[t]*Wx[k,c],
         cmix[c]  = sum_k Wc[k,c]*cond[k]   (t-independent, computed in-kernel).
    """
    C = wx.shape[0]
    eye = jnp.eye(C, dtype=jnp.float32)
    a = coeff1[:, None, None] * eye[None] - coeff2[:, None, None] * wx[None]  # (T,k,c)
    negc2 = -coeff2                                                           # (T,)
    bprime = -coeff2[:, None] * bias_tbl                                      # (T,C)
    return a.reshape(-1), negc2, bprime.reshape(-1)       # flat 1-D SMEM tables


def _plan_tiling(M, max_tile_rows=512):
    """Lane-dense layout: spatial dim M -> (rows, 128). Returns (Rp, tile_rows, num_m).

    tile_rows is a multiple of 8 (or the full dim for tiny inputs); the
    heuristic aims for >= 2 spatial tiles so the "parallel" axis can shard
    across both v7x TensorCores, capped so one (C=4, tile_rows, 128) f32 block
    stays ~1 MiB (comfortable under v5e's 16 MiB / v7x's 64 MiB VMEM).
    """
    R = _cdiv(M, 128)
    if R <= 8:
        return R, R, 1                       # full-dim block (allowed by (8,128) rule)
    num_tiles = max(2, _cdiv(R, max_tile_rows))
    tile_rows = _round_up(_cdiv(R, num_tiles), 8)
    Rp = _round_up(R, tile_rows)
    return Rp, tile_rows, Rp // tile_rows


# ---------------------------------------------------------------------------
# Pallas kernel: grid = (num_spatial_tiles, T).  For each spatial tile the
# t-axis runs sequentially with x_t held resident in the output VMEM block.
#   eps    = Wc^T cond + Wx^T x_t + b_t        (synthetic 1x1-conv eps model)
#   mean   = coeff1[t]*x_t - coeff2[t]*eps     (folded into A_t / b'_t / cmix)
#   x_next = mean + sigma[t]*z   (t > 0)       (z streamed per step from HBM)
#   x_0    = clip(mean, -1, 1)   (t == 0)
# ---------------------------------------------------------------------------
def ddpm_sample_kernel(a_ref, nc2_ref, bpr_ref, sg_ref, wc_ref,
                       cond_ref, xT_ref, z_ref, out_ref, cmix_ref):
    s = pl.program_id(1)                 # step index; diffusion time t = T-1-s
    T = pl.num_programs(1)
    t = T - 1 - s
    C = out_ref.shape[0]

    # First step for this tile: seed resident x block with x_T and precompute
    # the t-independent conditioning mix cmix[c] = sum_k Wc[k,c] * cond[k].
    @pl.when(s == 0)
    def _():
        out_ref[...] = xT_ref[...]
        for c in range(C):
            acc = wc_ref[c] * cond_ref[0]                 # k = 0 -> index 0*C+c
            for k in range(1, C):
                acc = acc + wc_ref[k * C + c] * cond_ref[k]
            cmix_ref[c] = acc

    # Current x_t: C dense (tile_rows, 128) slabs (loaded before any store).
    xs = [out_ref[c] for c in range(C)]
    nc2 = nc2_ref[t]
    sg = sg_ref[t]

    # Posterior mean with folded coefficients (VPU scalar-broadcast FMAs; the
    # MXU is deliberately unused for a C=4 channel mix).
    means = []
    for c in range(C):
        m = a_ref[(t * C) * C + c] * xs[0]
        for k in range(1, C):
            m = m + a_ref[(t * C + k) * C + c] * xs[k]
        means.append(m + nc2 * cmix_ref[c] + bpr_ref[t * C + c])

    @pl.when(s < T - 1)                  # t > 0: x_{t-1} = mean + sigma_t * z
    def _():
        for c in range(C):
            out_ref[c] = means[c] + sg * z_ref[c]

    @pl.when(s == T - 1)                 # t == 0: no noise; clip final sample
    def _():
        for c in range(C):
            out_ref[c] = jnp.clip(means[c], -1.0, 1.0)


# ---------------------------------------------------------------------------
# Jitted wrapper: layout plumbing (NCHW <-> dense channel-major) + pallas_call.
# ---------------------------------------------------------------------------
@functools.partial(jax.jit, static_argnames=("tile_rows",))
def ddpm_sample(a_flat, negc2, bprime_flat, sigma, wc_flat, condit, x_T, noise,
                *, tile_rows):
    B, C, H, W = x_T.shape
    T, _, Rp, _ = noise.shape
    M = B * H * W
    Mp = Rp * 128
    num_m = Rp // tile_rows

    def to_dense(x):                     # NCHW -> channel-major (C, rows, 128)
        x = jnp.transpose(x.astype(jnp.float32), (1, 0, 2, 3)).reshape(C, M)
        if Mp != M:
            x = jnp.pad(x, ((0, 0), (0, Mp - M)))   # padded pixels are harmless
        return x.reshape(C, Rp, 128)

    cond_d = to_dense(condit)
    x_d = to_dense(x_T)

    smem = pl.BlockSpec(memory_space=pltpu.MemorySpace.SMEM)
    tile = pl.BlockSpec((C, tile_rows, 128), lambda m, s: (0, m, 0))
    z_spec = pl.BlockSpec((None, C, tile_rows, 128), lambda m, s: (s, 0, m, 0))

    out = pl.pallas_call(
        ddpm_sample_kernel,
        out_shape=jax.ShapeDtypeStruct((C, Rp, 128), jnp.float32),
        grid=(num_m, T),
        in_specs=[
            smem,    # A_t flat      (T*C*C,)
            smem,    # -coeff2       (T,)
            smem,    # b'_t flat     (T*C,)
            smem,    # sigma         (T,)
            smem,    # Wc flat       (C*C,)
            tile,    # condit        (C, Rp, 128) -> resident block per tile
            tile,    # x_T           (C, Rp, 128) -> resident block per tile
            z_spec,  # noise         (T, C, Rp, 128) -> pipelined per step
        ],
        out_specs=tile,   # same block index across t -> x stays VMEM-resident
        scratch_shapes=[pltpu.VMEM((C, tile_rows, 128), jnp.float32)],  # cmix
        compiler_params=pltpu.CompilerParams(
            dimension_semantics=("parallel", "arbitrary"),
            vmem_limit_bytes=32 * 1024 * 1024),
    )(a_flat, negc2, bprime_flat, sigma, wc_flat, cond_d, x_d, noise)

    x0 = out.reshape(C, Mp)[:, :M].reshape(C, B, H, W)
    return jnp.transpose(x0, (1, 0, 2, 3)).astype(x_T.dtype)     # back to NCHW


# ---------------------------------------------------------------------------
# Sampler wrapper (mirrors DDPM_Sampler with a synthetic 1x1-conv eps model).
# ---------------------------------------------------------------------------
class DDPMSamplerPallas:
    # TODO(synk): the reference's arbitrary `self.model` U-Net is replaced by a
    # synthetic 1x1-conv eps model; tqdm progress bar, torch.isnan assert and
    # torchvision save_image side effects of the loop are omitted.
    def __init__(self, wc, wx, T, beta_1, beta_T, max_tile_rows=512):
        assert wc.shape == wx.shape and wc.shape[0] == wc.shape[1]
        self.T = T
        self.C = wc.shape[0]
        self.max_tile_rows = max_tile_rows
        self.wc = jnp.asarray(wc, jnp.float32)     # weights for condit channels
        self.wx = jnp.asarray(wx, jnp.float32)     # weights for x_t channels
        self.coeff1, self.coeff2, self.sigma = make_ddpm_buffers(T, beta_1, beta_T)
        self.bias_tbl = make_time_bias_table(T, self.C)
        self.a_flat, self.negc2, self.bprime_flat = make_folded_tables(
            self.coeff1, self.coeff2, self.wx, self.bias_tbl)
        self.wc_flat = self.wc.reshape(-1)

    def __call__(self, condit, x_T, key):
        B, C, H, W = x_T.shape
        Rp, tile_rows, _ = _plan_tiling(B * H * W, self.max_tile_rows)
        # Reproducible, tile-size-independent noise stream (plain jax.random).
        noise = jax.random.normal(key, (self.T, C, Rp, 128), dtype=jnp.float32)
        return ddpm_sample(self.a_flat, self.negc2, self.bprime_flat, self.sigma,
                           self.wc_flat, condit, x_T, noise, tile_rows=tile_rows)


# ---------------------------------------------------------------------------
# Pure-JAX reference of the same reverse-diffusion loop (for correctness).
# ---------------------------------------------------------------------------
def ddpm_reference(coeff1, coeff2, sigma, bias_tbl, wc, wx, condit, x_T, noise_nchw):
    T = coeff1.shape[0]
    x = x_T
    for t in reversed(range(T)):
        eps = (jnp.einsum("kc,bkhw->bchw", wc, condit)
               + jnp.einsum("kc,bkhw->bchw", wx, x)
               + bias_tbl[t][None, :, None, None])
        mean = coeff1[t] * x - coeff2[t] * eps
        x = mean + sigma[t] * noise_nchw[T - 1 - t] if t > 0 else mean
    return jnp.clip(x, -1.0, 1.0)


if __name__ == "__main__":
    B, C, H, W = 2, 4, 16, 16
    T = 8
    beta_1, beta_T = 1e-4, 2e-2

    key = jax.random.PRNGKey(0)
    k_c, k_x, k_wc, k_wx, k_noise = jax.random.split(key, 5)

    condit = jax.random.normal(k_c, (B, C, H, W), dtype=jnp.float32)
    x_T = jax.random.normal(k_x, (B, C, H, W), dtype=jnp.float32)

    # Deterministic synthetic eps-model weights (1x1 conv: 2C -> C, split).
    wc = 0.1 * jax.random.normal(k_wc, (C, C), dtype=jnp.float32)
    wx = 0.1 * jax.random.normal(k_wx, (C, C), dtype=jnp.float32)

    sampler = DDPMSamplerPallas(wc, wx, T, beta_1, beta_T)
    x_0 = jax.block_until_ready(sampler(condit, x_T, k_noise))

    assert x_0.shape == (B, C, H, W)
    assert bool(jnp.all(jnp.isfinite(x_0)))
    assert bool(jnp.all(x_0 <= 1.0)) and bool(jnp.all(x_0 >= -1.0))

    # Reference check with the identical noise stream (same key / layout).
    M = B * H * W
    Rp, _, _ = _plan_tiling(M, sampler.max_tile_rows)
    noise = jax.random.normal(k_noise, (T, C, Rp, 128), dtype=jnp.float32)
    noise_nchw = (noise.reshape(T, C, Rp * 128)[:, :, :M]
                  .reshape(T, C, B, H, W).transpose(0, 2, 1, 3, 4))
    x_ref = ddpm_reference(sampler.coeff1, sampler.coeff2, sampler.sigma,
                           sampler.bias_tbl, wc, wx, condit, x_T, noise_nchw)
    assert bool(jnp.allclose(x_0, x_ref, atol=1e-4, rtol=1e-4))

    print("KERNEL_OK")
</pallas_src>

<mosaic_0001>
module attributes {stable_mosaic.version = 11 : i64} {
  func.func @ddpm_sample_kernel(%arg0: i32, %arg1: i32, %arg2: memref<128xf32, #tpu.memory_space<smem>>, %arg3: memref<8xf32, #tpu.memory_space<smem>>, %arg4: memref<32xf32, #tpu.memory_space<smem>>, %arg5: memref<8xf32, #tpu.memory_space<smem>>, %arg6: memref<16xf32, #tpu.memory_space<smem>>, %arg7: memref<4x4x128xf32, #tpu.memory_space<vmem>>, %arg8: memref<4x4x128xf32, #tpu.memory_space<vmem>>, %arg9: memref<1x4x4x128xf32, #tpu.memory_space<vmem>>, %arg10: memref<4x4x128xf32, #tpu.memory_space<vmem>>, %arg11: memref<4x4x128xf32, #tpu.memory_space<vmem>>) attributes {dimension_semantics = [#tpu.dimension_semantics<parallel>, #tpu.dimension_semantics<arbitrary>], iteration_bounds = array<i64: 1, 8>, scalar_prefetch = 0 : i64, scratch_operands = 1 : i64, tpu.core_type = #tpu.core_type<tc>, window_params = [{transform_indices = @transform_0, window_bounds = array<i64: 128>}, {transform_indices = @transform_1, window_bounds = array<i64: 8>}, {transform_indices = @transform_2, window_bounds = array<i64: 32>}, {transform_indices = @transform_3, window_bounds = array<i64: 8>}, {transform_indices = @transform_4, window_bounds = array<i64: 16>}, {transform_indices = @transform_5, window_bounds = array<i64: 4, 4, 128>}, {transform_indices = @transform_6, window_bounds = array<i64: 4, 4, 128>}, {transform_indices = @transform_7, window_bounds = array<i64: 1, 4, 4, 128>}, {transform_indices = @transform_8, window_bounds = array<i64: 4, 4, 128>}]} {
    %c7_i32 = arith.constant 7 : i32
    %0 = arith.subi %c7_i32, %arg1 : i32
    %c0_i32 = arith.constant 0 : i32
    %1 = arith.cmpi eq, %arg1, %c0_i32 : i32
    %2 = arith.extui %1 : i1 to i32
    %c0_i32_0 = arith.constant 0 : i32
    %3 = arith.cmpi ne, %2, %c0_i32_0 : i32
    scf.if %3 {
      %c0_89 = arith.constant 0 : index
      %c0_90 = arith.constant 0 : index
      %c0_91 = arith.constant 0 : index
      %202 = vector.load %arg8[%c0_89, %c0_90, %c0_91] : memref<4x4x128xf32, #tpu.memory_space<vmem>>, vector<4x4x128xf32>
      %c0_92 = arith.constant 0 : index
      %c0_93 = arith.constant 0 : index
      %c0_94 = arith.constant 0 : index
      %203 = vector.load %arg10[%c0_92, %c0_93, %c0_94] : memref<4x4x128xf32, #tpu.memory_space<vmem>>, vector<4x4x128xf32>
      tpu.vector_store %arg10[%c0_92, %c0_93, %c0_94], %202 {strides = array<i32>} : memref<4x4x128xf32, #tpu.memory_space<vmem>>, vector<4x4x128xf32>,
      %c0_95 = arith.constant 0 : index
      %204 = memref.load %arg6[%c0_95] : memref<16xf32, #tpu.memory_space<smem>>
      %c0_96 = arith.constant 0 : index
      %c0_97 = arith.constant 0 : index
      %c0_98 = arith.constant 0 : index
      %205 = vector.load %arg7[%c0_96, %c0_97, %c0_98] : memref<4x4x128xf32, #tpu.memory_space<vmem>>, vector<1x4x128xf32>
      %206 = vector.shape_cast %205 : vector<1x4x128xf32> to vector<4x128xf32>
      %207 = vector.broadcast %204 : f32 to vector<4x128xf32>
      %208 = arith.mulf %207, %206 : vector<4x128xf32>
      %c4 = arith.constant 4 : index
      %209 = memref.load %arg6[%c4] : memref<16xf32, #tpu.memory_space<smem>>
      %c1_99 = arith.constant 1 : index
      %c0_100 = arith.constant 0 : index
      %c0_101 = arith.constant 0 : index
      %210 = vector.load %arg7[%c1_99, %c0_100, %c0_101] : memref<4x4x128xf32, #tpu.memory_space<vmem>>, vector<1x4x128xf32>
      %211 = vector.shape_cast %210 : vector<1x4x128xf32> to vector<4x128xf32>
      %212 = vector.broadcast %209 : f32 to vector<4x128xf32>
      %213 = arith.mulf %212, %211 : vector<4x128xf32>
      %214 = arith.addf %208, %213 : vector<4x128xf32>
      %c8 = arith.constant 8 : index
      %215 = memref.load %arg6[%c8] : memref<16xf32, #tpu.memory_space<smem>>
      %c2_102 = arith.constant 2 : index
      %c0_103 = arith.constant 0 : index
      %c0_104 = arith.constant 0 : index
      %216 = vector.load %arg7[%c2_102, %c0_103, %c0_104] : memref<4x4x128xf32, #tpu.memory_space<vmem>>, vector<1x4x128xf32>
      %217 = vector.shape_cast %216 : vector<1x4x128xf32> to vector<4x128xf32>
      %218 = vector.broadcast %215 : f32 to vector<4x128xf32>
      %219 = arith.mulf %218, %217 : vector<4x128xf32>
      %220 = arith.addf %214, %219 : vector<4x128xf32>
      %c12 = arith.constant 12 : index
      %221 = memref.load %arg6[%c12] : memref<16xf32, #tpu.memory_space<smem>>
      %c3_105 = arith.constant 3 : index
      %c0_106 = arith.constant 0 : index
      %c0_107 = arith.constant 0 : index
      %222 = vector.load %arg7[%c3_105, %c0_106, %c0_107] : memref<4x4x128xf32, #tpu.memory_space<vmem>>, vector<1x4x128xf32>
      %223 = vector.shape_cast %222 : vector<1x4x128xf32> to vector<4x128xf32>
      %224 = vector.broadcast %221 : f32 to vector<4x128xf32>
      %225 = arith.mulf %224, %223 : vector<4x128xf32>
      %226 = arith.addf %220, %225 : vector<4x128xf32>
      %c0_108 = arith.constant 0 : index
      %c0_109 = arith.constant 0 : index
      %c0_110 = arith.constant 0 : index
      %227 = vector.load %arg11[%c0_108, %c0_109, %c0_110] : memref<4x4x128xf32, #tpu.memory_space<vmem>>, vector<1x4x128xf32>
      %228 = vector.shape_cast %227 : vector<1x4x128xf32> to vector<4x128xf32>
      %229 = vector.shape_cast %226 : vector<4x128xf32> to vector<1x4x128xf32>
      tpu.vector_store %arg11[%c0_108, %c0_109, %c0_110], %229 {strides = array<i32>} : memref<4x4x128xf32, #tpu.memory_space<vmem>>, vector<1x4x128xf32>,
      %c1_111 = arith.constant 1 : index
      %230 = memref.load %arg6[%c1_111] : memref<16xf32, #tpu.memory_space<smem>>
      %c0_112 = arith.constant 0 : index
      %c0_113 = arith.constant 0 : index
      %c0_114 = arith.constant 0 : index
      %231 = vector.load %arg7[%c0_112, %c0_113, %c0_114] : memref<4x4x128xf32, #tpu.memory_space<vmem>>, vector<1x4x128xf32>
      %232 = vector.shape_cast %231 : vector<1x4x128xf32> to vector<4x128xf32>
      %233 = vector.broadcast %230 : f32 to vector<4x128xf32>
      %234 = arith.mulf %233, %232 : vector<4x128xf32>
      %c5 = arith.constant 5 : index
      %235 = memref.load %arg6[%c5] : memref<16xf32, #tpu.memory_space<smem>>
      %c1_115 = arith.constant 1 : index
      %c0_116 = arith.constant 0 : index
      %c0_117 = arith.constant 0 : index
      %236 = vector.load %arg7[%c1_115, %c0_116, %c0_117] : memref<4x4x128xf32, #tpu.memory_space<vmem>>, vector<1x4x128xf32>
      %237 = vector.shape_cast %236 : vector<1x4x128xf32> to vector<4x128xf32>
      %238 = vector.broadcast %235 : f32 to vector<4x128xf32>
      %239 = arith.mulf %238, %237 : vector<4x128xf32>
      %240 = arith.addf %234, %239 : vector<4x128xf32>
      %c9 = arith.constant 9 : index
      %241 = memref.load %arg6[%c9] : memref<16xf32, #tpu.memory_space<smem>>
      %c2_118 = arith.constant 2 : index
      %c0_119 = arith.constant 0 : index
      %c0_120 = arith.constant 0 : index
      %242 = vector.load %arg7[%c2_118, %c0_119, %c0_120] : memref<4x4x128xf32, #tpu.memory_space<vmem>>, vector<1x4x128xf32>
      %243 = vector.shape_cast %242 : vector<1x4x128xf32> to vector<4x128xf32>
      %244 = vector.broadcast %241 : f32 to vector<4x128xf32>
      %245 = arith.mulf %244, %243 : vector<4x128xf32>
      %246 = arith.addf %240, %245 : vector<4x128xf32>
      %c13 = arith.constant 13 : index
      %247 = memref.load %arg6[%c13] : memref<16xf32, #tpu.memory_space<smem>>
      %c3_121 = arith.constant 3 : index
      %c0_122 = arith.constant 0 : index
      %c0_123 = arith.constant 0 : index
      %248 = vector.load %arg7[%c3_121, %c0_122, %c0_123] : memref<4x4x128xf32, #tpu.memory_space<vmem>>, vector<1x4x128xf32>
      %249 = vector.shape_cast %248 : vector<1x4x128xf32> to vector<4x128xf32>
      %250 = vector.broadcast %247 : f32 to vector<4x128xf32>
      %251 = arith.mulf %250, %249 : vector<4x128xf32>
      %252 = arith.addf %246, %251 : vector<4x128xf32>
      %c1_124 = arith.constant 1 : index
      %c0_125 = arith.constant 0 : index
      %c0_126 = arith.constant 0 : index
      %253 = vector.load %arg11[%c1_124, %c0_125, %c0_126] : memref<4x4x128xf32, #tpu.memory_space<vmem>>, vector<1x4x128xf32>
      %254 = vector.shape_cast %253 : vector<1x4x128xf32> to vector<4x128xf32>
      %255 = vector.shape_cast %252 : vector<4x128xf32> to vector<1x4x128xf32>
      tpu.vector_store %arg11[%c1_124, %c0_125, %c0_126], %255 {strides = array<i32>} : memref<4x4x128xf32, #tpu.memory_space<vmem>>, vector<1x4x128xf32>,
      %c2_127 = arith.constant 2 : index
      %256 = memref.load %arg6[%c2_127] : memref<16xf32, #tpu.memory_space<smem>>
      %c0_128 = arith.constant 0 : index
      %c0_129 = arith.constant 0 : index
      %c0_130 = arith.constant 0 : index
      %257 = vector.load %arg7[%c0_128, %c0_129, %c0_130] : memref<4x4x128xf32, #tpu.memory_space<vmem>>, vector<1x4x128xf32>
      %258 = vector.shape_cast %257 : vector<1x4x128xf32> to vector<4x128xf32>
      %259 = vector.broadcast %256 : f32 to vector<4x128xf32>
      %260 = arith.mulf %259, %258 : vector<4x128xf32>
      %c6 = arith.constant 6 : index
      %261 = memref.load %arg6[%c6] : memref<16xf32, #tpu.memory_space<smem>>
      %c1_131 = arith.constant 1 : index
      %c0_132 = arith.constant 0 : index
      %c0_133 = arith.constant 0 : index
      %262 = vector.load %arg7[%c1_131, %c0_132, %c0_133] : memref<4x4x128xf32, #tpu.memory_space<vmem>>, vector<1x4x128xf32>
      %263 = vector.shape_cast %262 : vector<1x4x128xf32> to vector<4x128xf32>
      %264 = vector.broadcast %261 : f32 to vector<4x128xf32>
      %265 = arith.mulf %264, %263 : vector<4x128xf32>
      %266 = arith.addf %260, %265 : vector<4x128xf32>
      %c10 = arith.constant 10 : index
      %267 = memref.load %arg6[%c10] : memref<16xf32, #tpu.memory_space<smem>>
      %c2_134 = arith.constant 2 : index
      %c0_135 = arith.constant 0 : index
      %c0_136 = arith.constant 0 : index
      %268 = vector.load %arg7[%c2_134, %c0_135, %c0_136] : memref<4x4x128xf32, #tpu.memory_space<vmem>>, vector<1x4x128xf32>
      %269 = vector.shape_cast %268 : vector<1x4x128xf32> to vector<4x128xf32>
      %270 = vector.broadcast %267 : f32 to vector<4x128xf32>
      %271 = arith.mulf %270, %269 : vector<4x128xf32>
      %272 = arith.addf %266, %271 : vector<4x128xf32>
      %c14 = arith.constant 14 : index
      %273 = memref.load %arg6[%c14] : memref<16xf32, #tpu.memory_space<smem>>
      %c3_137 = arith.constant 3 : index
      %c0_138 = arith.constant 0 : index
      %c0_139 = arith.constant 0 : index
      %274 = vector.load %arg7[%c3_137, %c0_138, %c0_139] : memref<4x4x128xf32, #tpu.memory_space<vmem>>, vector<1x4x128xf32>
      %275 = vector.shape_cast %274 : vector<1x4x128xf32> to vector<4x128xf32>
      %276 = vector.broadcast %273 : f32 to vector<4x128xf32>
      %277 = arith.mulf %276, %275 : vector<4x128xf32>
      %278 = arith.addf %272, %277 : vector<4x128xf32>
      %c2_140 = arith.constant 2 : index
      %c0_141 = arith.constant 0 : index
      %c0_142 = arith.constant 0 : index
      %279 = vector.load %arg11[%c2_140, %c0_141, %c0_142] : memref<4x4x128xf32, #tpu.memory_space<vmem>>, vector<1x4x128xf32>
      %280 = vector.shape_cast %279 : vector<1x4x128xf32> to vector<4x128xf32>
      %281 = vector.shape_cast %278 : vector<4x128xf32> to vector<1x4x128xf32>
      tpu.vector_store %arg11[%c2_140, %c0_141, %c0_142], %281 {strides = array<i32>} : memref<4x4x128xf32, #tpu.memory_space<vmem>>, vector<1x4x128xf32>,
      %c3_143 = arith.constant 3 : index
      %282 = memref.load %arg6[%c3_143] : memref<16xf32, #tpu.memory_space<smem>>
      %c0_144 = arith.constant 0 : index
      %c0_145 = arith.constant 0 : index
      %c0_146 = arith.constant 0 : index
      %283 = vector.load %arg7[%c0_144, %c0_145, %c0_146] : memref<4x4x128xf32, #tpu.memory_space<vmem>>, vector<1x4x128xf32>
      %284 = vector.shape_cast %283 : vector<1x4x128xf32> to vector<4x128xf32>
      %285 = vector.broadcast %282 : f32 to vector<4x128xf32>
      %286 = arith.mulf %285, %284 : vector<4x128xf32>
      %c7 = arith.constant 7 : index
      %287 = memref.load %arg6[%c7] : memref<16xf32, #tpu.memory_space<smem>>
      %c1_147 = arith.constant 1 : index
      %c0_148 = arith.constant 0 : index
      %c0_149 = arith.constant 0 : index
      %288 = vector.load %arg7[%c1_147, %c0_148, %c0_149] : memref<4x4x128xf32, #tpu.memory_space<vmem>>, vector<1x4x128xf32>
      %289 = vector.shape_cast %288 : vector<1x4x128xf32> to vector<4x128xf32>
      %290 = vector.broadcast %287 : f32 to vector<4x128xf32>
      %291 = arith.mulf %290, %289 : vector<4x128xf32>
      %292 = arith.addf %286, %291 : vector<4x128xf32>
      %c11 = arith.constant 11 : index
      %293 = memref.load %arg6[%c11] : memref<16xf32, #tpu.memory_space<smem>>
      %c2_150 = arith.constant 2 : index
      %c0_151 = arith.constant 0 : index
      %c0_152 = arith.constant 0 : index
      %294 = vector.load %arg7[%c2_150, %c0_151, %c0_152] : memref<4x4x128xf32, #tpu.memory_space<vmem>>, vector<1x4x128xf32>
      %295 = vector.shape_cast %294 : vector<1x4x128xf32> to vector<4x128xf32>
      %296 = vector.broadcast %293 : f32 to vector<4x128xf32>
      %297 = arith.mulf %296, %295 : vector<4x128xf32>
      %298 = arith.addf %292, %297 : vector<4x128xf32>
      %c15 = arith.constant 15 : index
      %299 = memref.load %arg6[%c15] : memref<16xf32, #tpu.memory_space<smem>>
      %c3_153 = arith.constant 3 : index
      %c0_154 = arith.constant 0 : index
      %c0_155 = arith.constant 0 : index
      %300 = vector.load %arg7[%c3_153, %c0_154, %c0_155] : memref<4x4x128xf32, #tpu.memory_space<vmem>>, vector<1x4x128xf32>
      %301 = vector.shape_cast %300 : vector<1x4x128xf32> to vector<4x128xf32>
      %302 = vector.broadcast %299 : f32 to vector<4x128xf32>
      %303 = arith.mulf %302, %301 : vector<4x128xf32>
      %304 = arith.addf %298, %303 : vector<4x128xf32>
      %c3_156 = arith.constant 3 : index
      %c0_157 = arith.constant 0 : index
      %c0_158 = arith.constant 0 : index
      %305 = vector.load %arg11[%c3_156, %c0_157, %c0_158] : memref<4x4x128xf32, #tpu.memory_space<vmem>>, vector<1x4x128xf32>
      %306 = vector.shape_cast %305 : vector<1x4x128xf32> to vector<4x128xf32>
      %307 = vector.shape_cast %304 : vector<4x128xf32> to vector<1x4x128xf32>
      tpu.vector_store %arg11[%c3_156, %c0_157, %c0_158], %307 {strides = array<i32>} : memref<4x4x128xf32, #tpu.memory_space<vmem>>, vector<1x4x128xf32>,
    } else {
    }
    %c0 = arith.constant 0 : index
    %c0_1 = arith.constant 0 : index
    %c0_2 = arith.constant 0 : index
    %4 = vector.load %arg10[%c0, %c0_1, %c0_2] : memref<4x4x128xf32, #tpu.memory_space<vmem>>, vector<1x4x128xf32>
    %5 = vector.shape_cast %4 : vector<1x4x128xf32> to vector<4x128xf32>
    %c1 = arith.constant 1 : index
    %c0_3 = arith.constant 0 : index
    %c0_4 = arith.constant 0 : index
    %6 = vector.load %arg10[%c1, %c0_3, %c0_4] : memref<4x4x128xf32, #tpu.memory_space<vmem>>, vector<1x4x128xf32>
    %7 = vector.shape_cast %6 : vector<1x4x128xf32> to vector<4x128xf32>
    %c2 = arith.constant 2 : index
    %c0_5 = arith.constant 0 : index
    %c0_6 = arith.constant 0 : index
    %8 = vector.load %arg10[%c2, %c0_5, %c0_6] : memref<4x4x128xf32, #tpu.memory_space<vmem>>, vector<1x4x128xf32>
    %9 = vector.shape_cast %8 : vector<1x4x128xf32> to vector<4x128xf32>
    %c3 = arith.constant 3 : index
    %c0_7 = arith.constant 0 : index
    %c0_8 = arith.constant 0 : index
    %10 = vector.load %arg10[%c3, %c0_7, %c0_8] : memref<4x4x128xf32, #tpu.memory_space<vmem>>, vector<1x4x128xf32>
    %11 = vector.shape_cast %10 : vector<1x4x128xf32> to vector<4x128xf32>
    %12 = arith.index_cast %0 : i32 to index
    %13 = memref.load %arg3[%12] : memref<8xf32, #tpu.memory_space<smem>>
    %14 = arith.index_cast %0 : i32 to index
    %15 = memref.load %arg5[%14] : memref<8xf32, #tpu.memory_space<smem>>
    %c4_i32 = arith.constant 4 : i32
    %16 = arith.muli %0, %c4_i32 : i32
    %c4_i32_9 = arith.constant 4 : i32
    %17 = arith.muli %16, %c4_i32_9 : i32
    %c0_i32_10 = arith.constant 0 : i32
    %18 = arith.addi %17, %c0_i32_10 : i32
    %19 = arith.index_cast %18 : i32 to index
    %20 = memref.load %arg2[%19] : memref<128xf32, #tpu.memory_space<smem>>
    %21 = vector.broadcast %20 : f32 to vector<4x128xf32>
    %22 = arith.mulf %21, %5 : vector<4x128xf32>
    %c4_i32_11 = arith.constant 4 : i32
    %23 = arith.muli %0, %c4_i32_11 : i32
    %c1_i32 = arith.constant 1 : i32
    %24 = arith.addi %23, %c1_i32 : i32
    %c4_i32_12 = arith.constant 4 : i32
    %25 = arith.muli %24, %c4_i32_12 : i32
    %c0_i32_13 = arith.constant 0 : i32
    %26 = arith.addi %25, %c0_i32_13 : i32
    %27 = arith.index_cast %26 : i32 to index
    %28 = memref.load %arg2[%27] : memref<128xf32, #tpu.memory_space<smem>>
    %29 = vector.broadcast %28 : f32 to vector<4x128xf32>
    %30 = arith.mulf %29, %7 : vector<4x128xf32>
    %31 = arith.addf %22, %30 : vector<4x128xf32>
    %c4_i32_14 = arith.constant 4 : i32
    %32 = arith.muli %0, %c4_i32_14 : i32
    %c2_i32 = arith.constant 2 : i32
    %33 = arith.addi %32, %c2_i32 : i32
    %c4_i32_15 = arith.constant 4 : i32
    %34 = arith.muli %33, %c4_i32_15 : i32
    %c0_i32_16 = arith.constant 0 : i32
    %35 = arith.addi %34, %c0_i32_16 : i32
    %36 = arith.index_cast %35 : i32 to index
    %37 = memref.load %arg2[%36] : memref<128xf32, #tpu.memory_space<smem>>
    %38 = vector.broadcast %37 : f32 to vector<4x128xf32>
    %39 = arith.mulf %38, %9 : vector<4x128xf32>
    %40 = arith.addf %31, %39 : vector<4x128xf32>
    %c4_i32_17 = arith.constant 4 : i32
    %41 = arith.muli %0, %c4_i32_17 : i32
    %c3_i32 = arith.constant 3 : i32
    %42 = arith.addi %41, %c3_i32 : i32
    %c4_i32_18 = arith.constant 4 : i32
    %43 = arith.muli %42, %c4_i32_18 : i32
    %c0_i32_19 = arith.constant 0 : i32
    %44 = arith.addi %43, %c0_i32_19 : i32
    %45 = arith.index_cast %44 : i32 to index
    %46 = memref.load %arg2[%45] : memref<128xf32, #tpu.memory_space<smem>>
    %47 = vector.broadcast %46 : f32 to vector<4x128xf32>
    %48 = arith.mulf %47, %11 : vector<4x128xf32>
    %49 = arith.addf %40, %48 : vector<4x128xf32>
    %c0_20 = arith.constant 0 : index
    %c0_21 = arith.constant 0 : index
    %c0_22 = arith.constant 0 : index
    %50 = vector.load %arg11[%c0_20, %c0_21, %c0_22] : memref<4x4x128xf32, #tpu.memory_space<vmem>>, vector<1x4x128xf32>
    %51 = vector.shape_cast %50 : vector<1x4x128xf32> to vector<4x128xf32>
    %52 = vector.broadcast %13 : f32 to vector<4x128xf32>
    %53 = arith.mulf %52, %51 : vector<4x128xf32>
    %54 = arith.addf %49, %53 : vector<4x128xf32>
    %c4_i32_23 = arith.constant 4 : i32
    %55 = arith.muli %0, %c4_i32_23 : i32
    %c0_i32_24 = arith.constant 0 : i32
    %56 = arith.addi %55, %c0_i32_24 : i32
    %57 = arith.index_cast %56 : i32 to index
    %58 = memref.load %arg4[%57] : memref<32xf32, #tpu.memory_space<smem>>
    %59 = vector.broadcast %58 : f32 to vector<4x128xf32>
    %60 = arith.addf %54, %59 : vector<4x128xf32>
    %c4_i32_25 = arith.constant 4 : i32
    %61 = arith.muli %0, %c4_i32_25 : i32
    %c4_i32_26 = arith.constant 4 : i32
    %62 = arith.muli %61, %c4_i32_26 : i32
    %c1_i32_27 = arith.constant 1 : i32
    %63 = arith.addi %62, %c1_i32_27 : i32
    %64 = arith.index_cast %63 : i32 to index
    %65 = memref.load %arg2[%64] : memref<128xf32, #tpu.memory_space<smem>>
    %66 = vector.broadcast %65 : f32 to vector<4x128xf32>
    %67 = arith.mulf %66, %5 : vector<4x128xf32>
    %c4_i32_28 = arith.constant 4 : i32
    %68 = arith.muli %0, %c4_i32_28 : i32
    %c1_i32_29 = arith.constant 1 : i32
    %69 = arith.addi %68, %c1_i32_29 : i32
    %c4_i32_30 = arith.constant 4 : i32
    %70 = arith.muli %69, %c4_i32_30 : i32
    %c1_i32_31 = arith.constant 1 : i32
    %71 = arith.addi %70, %c1_i32_31 : i32
    %72 = arith.index_cast %71 : i32 to index
    %73 = memref.load %arg2[%72] : memref<128xf32, #tpu.memory_space<smem>>
    %74 = vector.broadcast %73 : f32 to vector<4x128xf32>
    %75 = arith.mulf %74, %7 : vector<4x128xf32>
    %76 = arith.addf %67, %75 : vector<4x128xf32>
    %c4_i32_32 = arith.constant 4 : i32
    %77 = arith.muli %0, %c4_i32_32 : i32
    %c2_i32_33 = arith.constant 2 : i32
    %78 = arith.addi %77, %c2_i32_33 : i32
    %c4_i32_34 = arith.constant 4 : i32
    %79 = arith.muli %78, %c4_i32_34 : i32
    %c1_i32_35 = arith.constant 1 : i32
    %80 = arith.addi %79, %c1_i32_35 : i32
    %81 = arith.index_cast %80 : i32 to index
    %82 = memref.load %arg2[%81] : memref<128xf32, #tpu.memory_space<smem>>
    %83 = vector.broadcast %82 : f32 to vector<4x128xf32>
    %84 = arith.mulf %83, %9 : vector<4x128xf32>
    %85 = arith.addf %76, %84 : vector<4x128xf32>
    %c4_i32_36 = arith.constant 4 : i32
    %86 = arith.muli %0, %c4_i32_36 : i32
    %c3_i32_37 = arith.constant 3 : i32
    %87 = arith.addi %86, %c3_i32_37 : i32
    %c4_i32_38 = arith.constant 4 : i32
    %88 = arith.muli %87, %c4_i32_38 : i32
    %c1_i32_39 = arith.constant 1 : i32
    %89 = arith.addi %88, %c1_i32_39 : i32
    %90 = arith.index_cast %89 : i32 to index
    %91 = memref.load %arg2[%90] : memref<128xf32, #tpu.memory_space<smem>>
    %92 = vector.broadcast %91 : f32 to vector<4x128xf32>
    %93 = arith.mulf %92, %11 : vector<4x128xf32>
    %94 = arith.addf %85, %93 : vector<4x128xf32>
    %c1_40 = arith.constant 1 : index
    %c0_41 = arith.constant 0 : index
    %c0_42 = arith.constant 0 : index
    %95 = vector.load %arg11[%c1_40, %c0_41, %c0_42] : memref<4x4x128xf32, #tpu.memory_space<vmem>>, vector<1x4x128xf32>
    %96 = vector.shape_cast %95 : vector<1x4x128xf32> to vector<4x128xf32>
    %97 = vector.broadcast %13 : f32 to vector<4x128xf32>
    %98 = arith.mulf %97, %96 : vector<4x128xf32>
    %99 = arith.addf %94, %98 : vector<4x128xf32>
    %c4_i32_43 = arith.constant 4 : i32
    %100 = arith.muli %0, %c4_i32_43 : i32
    %c1_i32_44 = arith.constant 1 : i32
    %101 = arith.addi %100, %c1_i32_44 : i32
    %102 = arith.index_cast %101 : i32 to index
    %103 = memref.load %arg4[%102] : memref<32xf32, #tpu.memory_space<smem>>
    %104 = vector.broadcast %103 : f32 to vector<4x128xf32>
    %105 = arith.addf %99, %104 : vector<4x128xf32>
    %c4_i32_45 = arith.constant 4 : i32
    %106 = arith.muli %0, %c4_i32_45 : i32
    %c4_i32_46 = arith.constant 4 : i32
    %107 = arith.muli %106, %c4_i32_46 : i32
    %c2_i32_47 = arith.constant 2 : i32
    %108 = arith.addi %107, %c2_i32_47 : i32
    %109 = arith.index_cast %108 : i32 to index
    %110 = memref.load %arg2[%109] : memref<128xf32, #tpu.memory_space<smem>>
    %111 = vector.broadcast %110 : f32 to vector<4x128xf32>
    %112 = arith.mulf %111, %5 : vector<4x128xf32>
    %c4_i32_48 = arith.constant 4 : i32
    %113 = arith.muli %0, %c4_i32_48 : i32
    %c1_i32_49 = arith.constant 1 : i32
    %114 = arith.addi %113, %c1_i32_49 : i32
    %c4_i32_50 = arith.constant 4 : i32
    %115 = arith.muli %114, %c4_i32_50 : i32
    %c2_i32_51 = arith.constant 2 : i32
    %116 = arith.addi %115, %c2_i32_51 : i32
    %117 = arith.index_cast %116 : i32 to index
    %118 = memref.load %arg2[%117] : memref<128xf32, #tpu.memory_space<smem>>
    %119 = vector.broadcast %118 : f32 to vector<4x128xf32>
    %120 = arith.mulf %119, %7 : vector<4x128xf32>
    %121 = arith.addf %112, %120 : vector<4x128xf32>
    %c4_i32_52 = arith.constant 4 : i32
    %122 = arith.muli %0, %c4_i32_52 : i32
    %c2_i32_53 = arith.constant 2 : i32
    %123 = arith.addi %122, %c2_i32_53 : i32
    %c4_i32_54 = arith.constant 4 : i32
    %124 = arith.muli %123, %c4_i32_54 : i32
    %c2_i32_55 = arith.constant 2 : i32
    %125 = arith.addi %124, %c2_i32_55 : i32
    %126 = arith.index_cast %125 : i32 to index
    %127 = memref.load %arg2[%126] : memref<128xf32, #tpu.memory_space<smem>>
    %128 = vector.broadcast %127 : f32 to vector<4x128xf32>
    %129 = arith.mulf %128, %9 : vector<4x128xf32>
    %130 = arith.addf %121, %129 : vector<4x128xf32>
    %c4_i32_56 = arith.constant 4 : i32
    %131 = arith.muli %0, %c4_i32_56 : i32
    %c3_i32_57 = arith.constant 3 : i32
    %132 = arith.addi %131, %c3_i32_57 : i32
    %c4_i32_58 = arith.constant 4 : i32
    %133 = arith.muli %132, %c4_i32_58 : i32
    %c2_i32_59 = arith.constant 2 : i32
    %134 = arith.addi %133, %c2_i32_59 : i32
    %135 = arith.index_cast %134 : i32 to index
    %136 = memref.load %arg2[%135] : memref<128xf32, #tpu.memory_space<smem>>
    %137 = vector.broadcast %136 : f32 to vector<4x128xf32>
    %138 = arith.mulf %137, %11 : vector<4x128xf32>
    %139 = arith.addf %130, %138 : vector<4x128xf32>
    %c2_60 = arith.constant 2 : index
    %c0_61 = arith.constant 0 : index
    %c0_62 = arith.constant 0 : index
    %140 = vector.load %arg11[%c2_60, %c0_61, %c0_62] : memref<4x4x128xf32, #tpu.memory_space<vmem>>, vector<1x4x128xf32>
    %141 = vector.shape_cast %140 : vector<1x4x128xf32> to vector<4x128xf32>
    %142 = vector.broadcast %13 : f32 to vector<4x128xf32>
    %143 = arith.mulf %142, %141 : vector<4x128xf32>
    %144 = arith.addf %139, %143 : vector<4x128xf32>
    %c4_i32_63 = arith.constant 4 : i32
    %145 = arith.muli %0, %c4_i32_63 : i32
    %c2_i32_64 = arith.constant 2 : i32
    %146 = arith.addi %145, %c2_i32_64 : i32
    %147 = arith.index_cast %146 : i32 to index
    %148 = memref.load %arg4[%147] : memref<32xf32, #tpu.memory_space<smem>>
    %149 = vector.broadcast %148 : f32 to vector<4x128xf32>
    %150 = arith.addf %144, %149 : vector<4x128xf32>
    %c4_i32_65 = arith.constant 4 : i32
    %151 = arith.muli %0, %c4_i32_65 : i32
    %c4_i32_66 = arith.constant 4 : i32
    %152 = arith.muli %151, %c4_i32_66 : i32
    %c3_i32_67 = arith.constant 3 : i32
    %153 = arith.addi %152, %c3_i32_67 : i32
    %154 = arith.index_cast %153 : i32 to index
    %155 = memref.load %arg2[%154] : memref<128xf32, #tpu.memory_space<smem>>
    %156 = vector.broadcast %155 : f32 to vector<4x128xf32>
    %157 = arith.mulf %156, %5 : vector<4x128xf32>
    %c4_i32_68 = arith.constant 4 : i32
    %158 = arith.muli %0, %c4_i32_68 : i32
    %c1_i32_69 = arith.constant 1 : i32
    %159 = arith.addi %158, %c1_i32_69 : i32
    %c4_i32_70 = arith.constant 4 : i32
    %160 = arith.muli %159, %c4_i32_70 : i32
    %c3_i32_71 = arith.constant 3 : i32
    %161 = arith.addi %160, %c3_i32_71 : i32
    %162 = arith.index_cast %161 : i32 to index
    %163 = memref.load %arg2[%162] : memref<128xf32, #tpu.memory_space<smem>>
    %164 = vector.broadcast %163 : f32 to vector<4x128xf32>
    %165 = arith.mulf %164, %7 : vector<4x128xf32>
    %166 = arith.addf %157, %165 : vector<4x128xf32>
    %c4_i32_72 = arith.constant 4 : i32
    %167 = arith.muli %0, %c4_i32_72 : i32
    %c2_i32_73 = arith.constant 2 : i32
    %168 = arith.addi %167, %c2_i32_73 : i32
    %c4_i32_74 = arith.constant 4 : i32
    %169 = arith.muli %168, %c4_i32_74 : i32
    %c3_i32_75 = arith.constant 3 : i32
    %170 = arith.addi %169, %c3_i32_75 : i32
    %171 = arith.index_cast %170 : i32 to index
    %172 = memref.load %arg2[%171] : memref<128xf32, #tpu.memory_space<smem>>
    %173 = vector.broadcast %172 : f32 to vector<4x128xf32>
    %174 = arith.mulf %173, %9 : vector<4x128xf32>
    %175 = arith.addf %166, %174 : vector<4x128xf32>
    %c4_i32_76 = arith.constant 4 : i32
    %176 = arith.muli %0, %c4_i32_76 : i32
    %c3_i32_77 = arith.constant 3 : i32
    %177 = arith.addi %176, %c3_i32_77 : i32
    %c4_i32_78 = arith.constant 4 : i32
    %178 = arith.muli %177, %c4_i32_78 : i32
    %c3_i32_79 = arith.constant 3 : i32
    %179 = arith.addi %178, %c3_i32_79 : i32
    %180 = arith.index_cast %179 : i32 to index
    %181 = memref.load %arg2[%180] : memref<128xf32, #tpu.memory_space<smem>>
    %182 = vector.broadcast %181 : f32 to vector<4x128xf32>
    %183 = arith.mulf %182, %11 : vector<4x128xf32>
    %184 = arith.addf %175, %183 : vector<4x128xf32>
    %c3_80 = arith.constant 3 : index
    %c0_81 = arith.constant 0 : index
    %c0_82 = arith.constant 0 : index
    %185 = vector.load %arg11[%c3_80, %c0_81, %c0_82] : memref<4x4x128xf32, #tpu.memory_space<vmem>>, vector<1x4x128xf32>
    %186 = vector.shape_cast %185 : vector<1x4x128xf32> to vector<4x128xf32>
    %187 = vector.broadcast %13 : f32 to vector<4x128xf32>
    %188 = arith.mulf %187, %186 : vector<4x128xf32>
    %189 = arith.addf %184, %188 : vector<4x128xf32>
    %c4_i32_83 = arith.constant 4 : i32
    %190 = arith.muli %0, %c4_i32_83 : i32
    %c3_i32_84 = arith.constant 3 : i32
    %191 = arith.addi %190, %c3_i32_84 : i32
    %192 = arith.index_cast %191 : i32 to index
    %193 = memref.load %arg4[%192] : memref<32xf32, #tpu.memory_space<smem>>
    %194 = vector.broadcast %193 : f32 to vector<4x128xf32>
    %195 = arith.addf %189, %194 : vector<4x128xf32>
    %c7_i32_85 = arith.constant 7 : i32
    %196 = arith.cmpi slt, %arg1, %c7_i32_85 : i32
    %197 = arith.extui %196 : i1 to i32
    %c0_i32_86 = arith.constant 0 : i32
    %198 = arith.cmpi ne, %197, %c0_i32_86 : i32
    scf.if %198 {
      %c0_89 = arith.constant 0 : index
      %c0_90 = arith.constant 0 : index
      %c0_91 = arith.constant 0 : index
      %c0_92 = arith.constant 0 : index
      %202 = vector.load %arg9[%c0_89, %c0_90, %c0_91, %c0_92] : memref<1x4x4x128xf32, #tpu.memory_space<vmem>>, vector<1x1x4x128xf32>
      %203 = vector.shape_cast %202 : vector<1x1x4x128xf32> to vector<4x128xf32>
      %204 = vector.broadcast %15 : f32 to vector<4x128xf32>
      %205 = arith.mulf %204, %203 : vector<4x128xf32>
      %206 = arith.addf %60, %205 : vector<4x128xf32>
      %c0_93 = arith.constant 0 : index
      %c0_94 = arith.constant 0 : index
      %c0_95 = arith.constant 0 : index
      %207 = vector.load %arg10[%c0_93, %c0_94, %c0_95] : memref<4x4x128xf32, #tpu.memory_space<vmem>>, vector<1x4x128xf32>
      %208 = vector.shape_cast %207 : vector<1x4x128xf32> to vector<4x128xf32>
      %209 = vector.shape_cast %206 : vector<4x128xf32> to vector<1x4x128xf32>
      tpu.vector_store %arg10[%c0_93, %c0_94, %c0_95], %209 {strides = array<i32>} : memref<4x4x128xf32, #tpu.memory_space<vmem>>, vector<1x4x128xf32>,
      %c0_96 = arith.constant 0 : index
      %c1_97 = arith.constant 1 : index
      %c0_98 = arith.constant 0 : index
      %c0_99 = arith.constant 0 : index
      %210 = vector.load %arg9[%c0_96, %c1_97, %c0_98, %c0_99] : memref<1x4x4x128xf32, #tpu.memory_space<vmem>>, vector<1x1x4x128xf32>
      %211 = vector.shape_cast %210 : vector<1x1x4x128xf32> to vector<4x128xf32>
      %212 = vector.broadcast %15 : f32 to vector<4x128xf32>
      %213 = arith.mulf %212, %211 : vector<4x128xf32>
      %214 = arith.addf %105, %213 : vector<4x128xf32>
      %c1_100 = arith.constant 1 : index
      %c0_101 = arith.constant 0 : index
      %c0_102 = arith.constant 0 : index
      %215 = vector.load %arg10[%c1_100, %c0_101, %c0_102] : memref<4x4x128xf32, #tpu.memory_space<vmem>>, vector<1x4x128xf32>
      %216 = vector.shape_cast %215 : vector<1x4x128xf32> to vector<4x128xf32>
      %217 = vector.shape_cast %214 : vector<4x128xf32> to vector<1x4x128xf32>
      tpu.vector_store %arg10[%c1_100, %c0_101, %c0_102], %217 {strides = array<i32>} : memref<4x4x128xf32, #tpu.memory_space<vmem>>, vector<1x4x128xf32>,
      %c0_103 = arith.constant 0 : index
      %c2_104 = arith.constant 2 : index
      %c0_105 = arith.constant 0 : index
      %c0_106 = arith.constant 0 : index
      %218 = vector.load %arg9[%c0_103, %c2_104, %c0_105, %c0_106] : memref<1x4x4x128xf32, #tpu.memory_space<vmem>>, vector<1x1x4x128xf32>
      %219 = vector.shape_cast %218 : vector<1x1x4x128xf32> to vector<4x128xf32>
      %220 = vector.broadcast %15 : f32 to vector<4x128xf32>
      %221 = arith.mulf %220, %219 : vector<4x128xf32>
      %222 = arith.addf %150, %221 : vector<4x128xf32>
      %c2_107 = arith.constant 2 : index
      %c0_108 = arith.constant 0 : index
      %c0_109 = arith.constant 0 : index
      %223 = vector.load %arg10[%c2_107, %c0_108, %c0_109] : memref<4x4x128xf32, #tpu.memory_space<vmem>>, vector<1x4x128xf32>
      %224 = vector.shape_cast %223 : vector<1x4x128xf32> to vector<4x128xf32>
      %225 = vector.shape_cast %222 : vector<4x128xf32> to vector<1x4x128xf32>
      tpu.vector_store %arg10[%c2_107, %c0_108, %c0_109], %225 {strides = array<i32>} : memref<4x4x128xf32, #tpu.memory_space<vmem>>, vector<1x4x128xf32>,
      %c0_110 = arith.constant 0 : index
      %c3_111 = arith.constant 3 : index
      %c0_112 = arith.constant 0 : index
      %c0_113 = arith.constant 0 : index
      %226 = vector.load %arg9[%c0_110, %c3_111, %c0_112, %c0_113] : memref<1x4x4x128xf32, #tpu.memory_space<vmem>>, vector<1x1x4x128xf32>
      %227 = vector.shape_cast %226 : vector<1x1x4x128xf32> to vector<4x128xf32>
      %228 = vector.broadcast %15 : f32 to vector<4x128xf32>
      %229 = arith.mulf %228, %227 : vector<4x128xf32>
      %230 = arith.addf %195, %229 : vector<4x128xf32>
      %c3_114 = arith.constant 3 : index
      %c0_115 = arith.constant 0 : index
      %c0_116 = arith.constant 0 : index
      %231 = vector.load %arg10[%c3_114, %c0_115, %c0_116] : memref<4x4x128xf32, #tpu.memory_space<vmem>>, vector<1x4x128xf32>
      %232 = vector.shape_cast %231 : vector<1x4x128xf32> to vector<4x128xf32>
      %233 = vector.shape_cast %230 : vector<4x128xf32> to vector<1x4x128xf32>
      tpu.vector_store %arg10[%c3_114, %c0_115, %c0_116], %233 {strides = array<i32>} : memref<4x4x128xf32, #tpu.memory_space<vmem>>, vector<1x4x128xf32>,
    } else {
    }
    %c7_i32_87 = arith.constant 7 : i32
    %199 = arith.cmpi eq, %arg1, %c7_i32_87 : i32
    %200 = arith.extui %199 : i1 to i32
    %c0_i32_88 = arith.constant 0 : i32
    %201 = arith.cmpi ne, %200, %c0_i32_88 : i32
    scf.if %201 {
      %cst = arith.constant -1.000000e+00 : f32
      %cst_89 = arith.constant 1.000000e+00 : f32
      %202 = vector.broadcast %cst : f32 to vector<4x128xf32>
      %203 = arith.maximumf %202, %60 : vector<4x128xf32>
      %204 = vector.broadcast %cst_89 : f32 to vector<4x128xf32>
      %205 = arith.minimumf %204, %203 : vector<4x128xf32>
      %c0_90 = arith.constant 0 : index
      %c0_91 = arith.constant 0 : index
      %c0_92 = arith.constant 0 : index
      %206 = vector.load %arg10[%c0_90, %c0_91, %c0_92] : memref<4x4x128xf32, #tpu.memory_space<vmem>>, vector<1x4x128xf32>
      %207 = vector.shape_cast %206 : vector<1x4x128xf32> to vector<4x128xf32>
      %208 = vector.shape_cast %205 : vector<4x128xf32> to vector<1x4x128xf32>
      tpu.vector_store %arg10[%c0_90, %c0_91, %c0_92], %208 {strides = array<i32>} : memref<4x4x128xf32, #tpu.memory_space<vmem>>, vector<1x4x128xf32>,
      %cst_93 = arith.constant -1.000000e+00 : f32
      %cst_94 = arith.constant 1.000000e+00 : f32
      %209 = vector.broadcast %cst_93 : f32 to vector<4x128xf32>
      %210 = arith.maximumf %209, %105 : vector<4x128xf32>
      %211 = vector.broadcast %cst_94 : f32 to vector<4x128xf32>
      %212 = arith.minimumf %211, %210 : vector<4x128xf32>
      %c1_95 = arith.constant 1 : index
      %c0_96 = arith.constant 0 : index
      %c0_97 = arith.constant 0 : index
      %213 = vector.load %arg10[%c1_95, %c0_96, %c0_97] : memref<4x4x128xf32, #tpu.memory_space<vmem>>, vector<1x4x128xf32>
      %214 = vector.shape_cast %213 : vector<1x4x128xf32> to vector<4x128xf32>
      %215 = vector.shape_cast %212 : vector<4x128xf32> to vector<1x4x128xf32>
      tpu.vector_store %arg10[%c1_95, %c0_96, %c0_97], %215 {strides = array<i32>} : memref<4x4x128xf32, #tpu.memory_space<vmem>>, vector<1x4x128xf32>,
      %cst_98 = arith.constant -1.000000e+00 : f32
      %cst_99 = arith.constant 1.000000e+00 : f32
      %216 = vector.broadcast %cst_98 : f32 to vector<4x128xf32>
      %217 = arith.maximumf %216, %150 : vector<4x128xf32>
      %218 = vector.broadcast %cst_99 : f32 to vector<4x128xf32>
      %219 = arith.minimumf %218, %217 : vector<4x128xf32>
      %c2_100 = arith.constant 2 : index
      %c0_101 = arith.constant 0 : index
      %c0_102 = arith.constant 0 : index
      %220 = vector.load %arg10[%c2_100, %c0_101, %c0_102] : memref<4x4x128xf32, #tpu.memory_space<vmem>>, vector<1x4x128xf32>
      %221 = vector.shape_cast %220 : vector<1x4x128xf32> to vector<4x128xf32>
      %222 = vector.shape_cast %219 : vector<4x128xf32> to vector<1x4x128xf32>
      tpu.vector_store %arg10[%c2_100, %c0_101, %c0_102], %222 {strides = array<i32>} : memref<4x4x128xf32, #tpu.memory_space<vmem>>, vector<1x4x128xf32>,
      %cst_103 = arith.constant -1.000000e+00 : f32
      %cst_104 = arith.constant 1.000000e+00 : f32
      %223 = vector.broadcast %cst_103 : f32 to vector<4x128xf32>
      %224 = arith.maximumf %223, %195 : vector<4x128xf32>
      %225 = vector.broadcast %cst_104 : f32 to vector<4x128xf32>
      %226 = arith.minimumf %225, %224 : vector<4x128xf32>
      %c3_105 = arith.constant 3 : index
      %c0_106 = arith.constant 0 : index
      %c0_107 = arith.constant 0 : index
      %227 = vector.load %arg10[%c3_105, %c0_106, %c0_107] : memref<4x4x128xf32, #tpu.memory_space<vmem>>, vector<1x4x128xf32>
      %228 = vector.shape_cast %227 : vector<1x4x128xf32> to vector<4x128xf32>
      %229 = vector.shape_cast %226 : vector<4x128xf32> to vector<1x4x128xf32>
      tpu.vector_store %arg10[%c3_105, %c0_106, %c0_107], %229 {strides = array<i32>} : memref<4x4x128xf32, #tpu.memory_space<vmem>>, vector<1x4x128xf32>,
    } else {
    }
    return
  }
  func.func @transform_0(%arg0: i32, %arg1: i32) -> i32 {
    %c0_i32 = arith.constant 0 : i32
    %c0_i32_0 = arith.constant 0 : i32
    return %c0_i32 : i32
  }
  func.func @transform_1(%arg0: i32, %arg1: i32) -> i32 {
    %c0_i32 = arith.constant 0 : i32
    %c0_i32_0 = arith.constant 0 : i32
    return %c0_i32 : i32
  }
  func.func @transform_2(%arg0: i32, %arg1: i32) -> i32 {
    %c0_i32 = arith.constant 0 : i32
    %c0_i32_0 = arith.constant 0 : i32
    return %c0_i32 : i32
  }
  func.func @transform_3(%arg0: i32, %arg1: i32) -> i32 {
    %c0_i32 = arith.constant 0 : i32
    %c0_i32_0 = arith.constant 0 : i32
    return %c0_i32 : i32
  }
  func.func @transform_4(%arg0: i32, %arg1: i32) -> i32 {
    %c0_i32 = arith.constant 0 : i32
    %c0_i32_0 = arith.constant 0 : i32
    return %c0_i32 : i32
  }
  func.func @transform_5(%arg0: i32, %arg1: i32) -> (i32, i32, i32) {
    %c0_i32 = arith.constant 0 : i32
    %c0_i32_0 = arith.constant 0 : i32
    %c0_i32_1 = arith.constant 0 : i32
    return %c0_i32, %arg0, %c0_i32_0 : i32, i32, i32
  }
  func.func @transform_6(%arg0: i32, %arg1: i32) -> (i32, i32, i32) {
    %c0_i32 = arith.constant 0 : i32
    %c0_i32_0 = arith.constant 0 : i32
    %c0_i32_1 = arith.constant 0 : i32
    return %c0_i32, %arg0, %c0_i32_0 : i32, i32, i32
  }
  func.func @transform_7(%arg0: i32, %arg1: i32) -> (i32, i32, i32, i32) {
    %c0_i32 = arith.constant 0 : i32
    %c0_i32_0 = arith.constant 0 : i32
    %c0_i32_1 = arith.constant 0 : i32
    return %arg1, %c0_i32, %arg0, %c0_i32_0 : i32, i32, i32, i32
  }
  func.func @transform_8(%arg0: i32, %arg1: i32) -> (i32, i32, i32) {
    %c0_i32 = arith.constant 0 : i32
    %c0_i32_0 = arith.constant 0 : i32
    %c0_i32_1 = arith.constant 0 : i32
    return %c0_i32, %arg0, %c0_i32_0 : i32, i32, i32
  }
}

</mosaic_0001>

<llo_original>
// kernel: ddpm_sample.1
$region0: #{ddpm_sample.1}
  #allocation0 [shape = 'u32[]', space=smem, size = 0x4, offset = 0x4, fixed_abs, tag = 'smem constant byte address 0x4 - core index']
  #allocation1 [shape = 'u32[72,128]{1,0:T(1,128)}', space=vmem, size = 0x9000, scoped, tag = 'internal scratch']
  #allocation2 [shape = 'f32[4,4,128]{2,1,0:T(4,128)}', space=vmem, size = 0x2000, scoped, tag = 'scratch operand']
  %s0 = inlined_call_operand.vmem [shape: f32[128], index: 0, kind: input, shape index: {}]
  %s1 = inlined_call_operand.vmem [shape: f32[8], index: 1, kind: input, shape index: {}]
  %s2 = inlined_call_operand.vmem [shape: f32[32], index: 2, kind: input, shape index: {}]
  %s3 = inlined_call_operand.vmem [shape: f32[8], index: 3, kind: input, shape index: {}]
  %s4 = inlined_call_operand.vmem [shape: f32[16], index: 4, kind: input, shape index: {}]
  %s5 = inlined_call_operand.vmem [shape: f32[4,4,128], index: 5, kind: input, shape index: {}]
  %s6 = inlined_call_operand.vmem [shape: f32[4,4,128], index: 6, kind: input, shape index: {}]
  %s7 = inlined_call_operand.vmem [shape: f32[8,4,4,128], index: 7, kind: input, shape index: {}]
  %s8 = inlined_call_operand.vmem [shape: f32[4,4,128], index: 8, kind: output, shape index: {}]
  %s9 = sld [smem:[#allocation0]]
  $region97: #{ddpm_sample.1} parent=0
    _
  %s11 = ssub.s32 1, %s9
  %s12 = scalar_select 0, %s11, %s9
  $region1: #{ddpm_sample.1} parent=0
    #allocation3 [shape = 'u8[512]{0}', space=smem, size = 0x200, scoped, tag = 'input window, operand 0, single buffered']
    #allocation4 [shape = 's32[2]{0}', space=sflag, size = 0x8, scoped, tag = 'scoped memory for ddpm_sample.1']
    #allocation5 [shape = 'u8[512]{0}', space=smem, size = 0x200, scoped, tag = 'input window, operand 1, single buffered']
    #allocation6 [shape = 's32[1]{0}', space=sflag, size = 0x4, scoped, tag = 'scoped memory for ddpm_sample.1']
    #allocation7 [shape = 'u8[512]{0}', space=smem, size = 0x200, scoped, tag = 'input window, operand 2, single buffered']
    #allocation8 [shape = 'u8[512]{0}', space=smem, size = 0x200, scoped, tag = 'input window, operand 3, single buffered']
    #allocation9 [shape = 's32[1]{0}', space=sflag, size = 0x4, scoped, tag = 'scoped memory for ddpm_sample.1']
    #allocation10 [shape = 'u8[512]{0}', space=smem, size = 0x200, scoped, tag = 'input window, operand 4, single buffered']
    %13 = vsyncpa [#allocation4], 0
    %14 = vsyncpa [#allocation6], 0
    %15 = vsyncpa [#allocation9], 0
    loop: start=0, step=1, limit=10
    $region2: #{ddpm_sample.1} parent=1 // loop_pre_header
      _
    $region3: #{ddpm_sample.1} parent=1 // loop_header
      %s17 = sphi 0, %s21
      %p18 = scmp.ge.s32.totalorder %s17, 10
      %s24 = sphi 0, %s36
      %s25 = sphi 0, %s32
      %s26 = sphi 0, %s24
      %s27 = sphi 0, %s25
      %s28 = sphi 0, %s26
      %s29 = sphi 0, %s27
      %s37 = sphi 0, %s37
      %s39 = sphi 0, %s37
      %s40 = sphi 0, %s39
      %s54 = sphi 0, %s40
      %s58 = sphi 0, %s58
      %s60 = sphi 0, %s58
      %s61 = sphi 0, %s60
      %s75 = sphi 0, %s61
      %s79 = sphi 0, %s79
      %s81 = sphi 0, %s79
      %s82 = sphi 0, %s81
      %s96 = sphi 0, %s82
      %s100 = sphi 0, %s100
      %s102 = sphi 0, %s100
      %s103 = sphi 0, %s102
      %s117 = sphi 0, %s103
      %s121 = sphi 0, %s121
      %s123 = sphi 0, %s121
      %s124 = sphi 0, %s123
      %s138 = sphi 0, %s124
      %s144 = sphi 0, %s146
      %s147 = sphi 0, %s144
      %s148 = sphi 0, %s147
      %s164 = sphi 0, %s148
      %s170 = sphi 0, %s172
      %s173 = sphi 0, %s170
      %s174 = sphi 0, %s173
      %s190 = sphi 0, %s174
      %s198 = sphi 0, %s200
      %s201 = sphi 0, %s198
      %s202 = sphi 0, %s201
      %s218 = sphi 0, %s202
      %s224 = sphi 0, %s226
      %s227 = sphi 0, %s224
      %s228 = sphi 0, %s227
      %s244 = sphi 0, %s228
    $region4: #{ddpm_sample.1} parent=1 // loop_header_branch
      %20 = sbr.rel (%p18) target = $region8
    $region5: #{ddpm_sample.1} parent=1 // loop_body
      %s22 = ssub.s32 %s17, 1
      %s23 = ssub.s32 %s17, 2
      %s30 = sadd.s32 1, %s25
      %p31 = scmp.ge.s32.totalorder %s30, 8
      %s32 = scalar_select %p31, 0, %s30
      %s33 = sadd.s32 1, %s24
      %s34 = scalar_select %p31, %s33, %s24
      %p35 = scmp.ge.s32.totalorder %s34, 1
      %s36 = scalar_select %p35, 0, %s34
      %s38 = sadd.s32 %s37, 1
      %p41 = scmp.eq.s32.totalorder %s17, 7
      %p42 = scmp.ne.s32.totalorder %s37, %s39
      %p43 = scmp.eq.s32.totalorder %s17, 0
      %p44 = por %p42, %p43
      %p45 = scmp.ne.s32.totalorder %s37, %s39
      %p46 = scmp.eq.s32.totalorder %s22, 7
      %p47 = por %p45, %p46
      %p48 = scmp.ne.s32.totalorder %s39, %s40
      %p49 = scmp.eq.s32.totalorder %s22, 0
      %p50 = por %p48, %p49
      %p51 = scmp.ne.s32.totalorder %s39, %s40
      %p52 = scmp.eq.s32.totalorder %s23, 7
      %p53 = por %p51, %p52
      %p55 = scmp.ne.s32.totalorder %s40, %s54
      %p56 = scmp.eq.s32.totalorder %s23, 0
      %p57 = por %p55, %p56
      %s59 = sadd.s32 %s58, 1
      %p62 = scmp.eq.s32.totalorder %s17, 7
      %p63 = scmp.ne.s32.totalorder %s58, %s60
      %p64 = scmp.eq.s32.totalorder %s17, 0
      %p65 = por %p63, %p64
      %p66 = scmp.ne.s32.totalorder %s58, %s60
      %p67 = scmp.eq.s32.totalorder %s22, 7
      %p68 = por %p66, %p67
      %p69 = scmp.ne.s32.totalorder %s60, %s61
      %p70 = scmp.eq.s32.totalorder %s22, 0
      %p71 = por %p69, %p70
      %p72 = scmp.ne.s32.totalorder %s60, %s61
      %p73 = scmp.eq.s32.totalorder %s23, 7
      %p74 = por %p72, %p73
      %p76 = scmp.ne.s32.totalorder %s61, %s75
      %p77 = scmp.eq.s32.totalorder %s23, 0
      %p78 = por %p76, %p77
      %s80 = sadd.s32 %s79, 1
      %p83 = scmp.eq.s32.totalorder %s17, 7
      %p84 = scmp.ne.s32.totalorder %s79, %s81
      %p85 = scmp.eq.s32.totalorder %s17, 0
      %p86 = por %p84, %p85
      %p87 = scmp.ne.s32.totalorder %s79, %s81
      %p88 = scmp.eq.s32.totalorder %s22, 7
      %p89 = por %p87, %p88
      %p90 = scmp.ne.s32.totalorder %s81, %s82
      %p91 = scmp.eq.s32.totalorder %s22, 0
      %p92 = por %p90, %p91
      %p93 = scmp.ne.s32.totalorder %s81, %s82
      %p94 = scmp.eq.s32.totalorder %s23, 7
      %p95 = por %p93, %p94
      %p97 = scmp.ne.s32.totalorder %s82, %s96
      %p98 = scmp.eq.s32.totalorder %s23, 0
      %p99 = por %p97, %p98
      %s101 = sadd.s32 %s100, 1
      %p104 = scmp.eq.s32.totalorder %s17, 7
      %p105 = scmp.ne.s32.totalorder %s100, %s102
      %p106 = scmp.eq.s32.totalorder %s17, 0
      %p107 = por %p105, %p106
      %p108 = scmp.ne.s32.totalorder %s100, %s102
      %p109 = scmp.eq.s32.totalorder %s22, 7
      %p110 = por %p108, %p109
      %p111 = scmp.ne.s32.totalorder %s102, %s103
      %p112 = scmp.eq.s32.totalorder %s22, 0
      %p113 = por %p111, %p112
      %p114 = scmp.ne.s32.totalorder %s102, %s103
      %p115 = scmp.eq.s32.totalorder %s23, 7
      %p116 = por %p114, %p115
      %p118 = scmp.ne.s32.totalorder %s103, %s117
      %p119 = scmp.eq.s32.totalorder %s23, 0
      %p120 = por %p118, %p119
      %s122 = sadd.s32 %s121, 1
      %p125 = scmp.eq.s32.totalorder %s17, 7
      %p126 = scmp.ne.s32.totalorder %s121, %s123
      %p127 = scmp.eq.s32.totalorder %s17, 0
      %p128 = por %p126, %p127
      %p129 = scmp.ne.s32.totalorder %s121, %s123
      %p130 = scmp.eq.s32.totalorder %s22, 7
      %p131 = por %p129, %p130
      %p132 = scmp.ne.s32.totalorder %s123, %s124
      %p133 = scmp.eq.s32.totalorder %s22, 0
      %p134 = por %p132, %p133
      %p135 = scmp.ne.s32.totalorder %s123, %s124
      %p136 = scmp.eq.s32.totalorder %s23, 7
      %p137 = por %p135, %p136
      %p139 = scmp.ne.s32.totalorder %s124, %s138
      %p140 = scmp.eq.s32.totalorder %s23, 0
      %p141 = por %p139, %p140
      %s142 = ssub.s32 %s24, %s36
      %p143 = scmp.eq.s32.totalorder %s142, 0
      %s145 = sadd.s32 %s144, 1
      %s146 = scalar_select %p143, %s144, %s145
      %p149 = pneg %p143
      %p150 = scmp.eq.s32.totalorder %s17, 7
      %p151 = por %p149, %p150
      %p152 = scmp.ne.s32.totalorder %s144, %s147
      %p153 = scmp.eq.s32.totalorder %s17, 0
      %p154 = por %p152, %p153
      %p155 = scmp.ne.s32.totalorder %s144, %s147
      %p156 = scmp.eq.s32.totalorder %s22, 7
      %p157 = por %p155, %p156
      %p158 = scmp.ne.s32.totalorder %s147, %s148
      %p159 = scmp.eq.s32.totalorder %s22, 0
      %p160 = por %p158, %p159
      %p161 = scmp.ne.s32.totalorder %s147, %s148
      %p162 = scmp.eq.s32.totalorder %s23, 7
      %p163 = por %p161, %p162
      %p165 = scmp.ne.s32.totalorder %s148, %s164
      %p166 = scmp.eq.s32.totalorder %s23, 0
      %p167 = por %p165, %p166
      %s168 = ssub.s32 %s24, %s36
      %p169 = scmp.eq.s32.totalorder %s168, 0
      %s171 = sadd.s32 %s170, 1
      %s172 = scalar_select %p169, %s170, %s171
      %p175 = pneg %p169
      %p176 = scmp.eq.s32.totalorder %s17, 7
      %p177 = por %p175, %p176
      %p178 = scmp.ne.s32.totalorder %s170, %s173
      %p179 = scmp.eq.s32.totalorder %s17, 0
      %p180 = por %p178, %p179
      %p181 = scmp.ne.s32.totalorder %s170, %s173
      %p182 = scmp.eq.s32.totalorder %s22, 7
      %p183 = por %p181, %p182
      %p184 = scmp.ne.s32.totalorder %s173, %s174
      %p185 = scmp.eq.s32.totalorder %s22, 0
      %p186 = por %p184, %p185
      %p187 = scmp.ne.s32.totalorder %s173, %s174
      %p188 = scmp.eq.s32.totalorder %s23, 7
      %p189 = por %p187, %p188
      %p191 = scmp.ne.s32.totalorder %s174, %s190
      %p192 = scmp.eq.s32.totalorder %s23, 0
      %p193 = por %p191, %p192
      %s194 = ssub.s32 %s25, %s32
      %s195 = ssub.s32 %s24, %s36
      %s196 = sor.u32 %s194, %s195
      %p197 = scmp.eq.s32.totalorder %s196, 0
      %s199 = sadd.s32 %s198, 1
      %s200 = scalar_select %p197, %s198, %s199
      %p203 = pneg %p197
      %p204 = scmp.eq.s32.totalorder %s17, 7
      %p205 = por %p203, %p204
      %p206 = scmp.ne.s32.totalorder %s198, %s201
      %p207 = scmp.eq.s32.totalorder %s17, 0
      %p208 = por %p206, %p207
      %p209 = scmp.ne.s32.totalorder %s198, %s201
      %p210 = scmp.eq.s32.totalorder %s22, 7
      %p211 = por %p209, %p210
      %p212 = scmp.ne.s32.totalorder %s201, %s202
      %p213 = scmp.eq.s32.totalorder %s22, 0
      %p214 = por %p212, %p213
      %p215 = scmp.ne.s32.totalorder %s201, %s202
      %p216 = scmp.eq.s32.totalorder %s23, 7
      %p217 = por %p215, %p216
      %p219 = scmp.ne.s32.totalorder %s202, %s218
      %p220 = scmp.eq.s32.totalorder %s23, 0
      %p221 = por %p219, %p220
      %s222 = ssub.s32 %s24, %s36
      %p223 = scmp.eq.s32.totalorder %s222, 0
      %s225 = sadd.s32 %s224, 1
      %s226 = scalar_select %p223, %s224, %s225
      %p229 = pneg %p223
      %p230 = scmp.eq.s32.totalorder %s17, 7
      %p231 = por %p229, %p230
      %p232 = scmp.ne.s32.totalorder %s224, %s227
      %p233 = scmp.eq.s32.totalorder %s17, 0
      %p234 = por %p232, %p233
      %p235 = scmp.ne.s32.totalorder %s224, %s227
      %p236 = scmp.eq.s32.totalorder %s22, 7
      %p237 = por %p235, %p236
      %p238 = scmp.ne.s32.totalorder %s227, %s228
      %p239 = scmp.eq.s32.totalorder %s22, 0
      %p240 = por %p238, %p239
      %p241 = scmp.ne.s32.totalorder %s227, %s228
      %p242 = scmp.eq.s32.totalorder %s23, 7
      %p243 = por %p241, %p242
      %p245 = scmp.ne.s32.totalorder %s228, %s244
      %p246 = scmp.eq.s32.totalorder %s23, 0
      %p247 = por %p245, %p246
      %p248 = scmp.le.s32.totalorder 1, %s17
      %p249 = scmp.lt.s32.totalorder %s17, 9
      %p250 = pnand %p248, %p249
      %p251 = pneg %p250
      // Predicated region
      $region9: #{ddpm_sample.1} parent=5 // pred_check
        _
      $region10: #{ddpm_sample.1} parent=5 // pred_check_branch
        %253 = sbr.rel (%p250) target = $region12
      $region11: #{ddpm_sample.1} parent=5 // pred_region
        %s254 = ssub.s32 %s17, 1
        // Predicated region
        $region13: #{ddpm_sample.1} parent=11 // pred_check
          %p255 = pneg %p50
        $region14: #{ddpm_sample.1} parent=11 // pred_check_branch
          %257 = sbr.rel (%p255) target = $region16
        $region15: #{ddpm_sample.1} parent=11 // pred_region
          %259 = vsyncadd [#allocation4], 0
          %s261 = sshll.u32 %s0, 4
          %s262 = int_to_ptr.vmem [resolvable:$true] %s261
          %264 = dma.vmem_to_smem %s262, 16, [#allocation3], [#allocation4]
        $region16: #{ddpm_sample.1} parent=11 // pred_fallthru
          _
        // Predicated region
        $region17: #{ddpm_sample.1} parent=11 // pred_check
          %p265 = pneg %p71
        $region18: #{ddpm_sample.1} parent=11 // pred_check_branch
          %267 = sbr.rel (%p265) target = $region20
        $region19: #{ddpm_sample.1} parent=11 // pred_region
          %269 = vsyncadd [#allocation6], 0
          %s271 = sshll.u32 %s1, 4
          %s272 = int_to_ptr.vmem [resolvable:$true] %s271
          %274 = dma.vmem_to_smem %s272, 16, [#allocation5], [#allocation6]
        $region20: #{ddpm_sample.1} parent=11 // pred_fallthru
          _
        // Predicated region
        $region21: #{ddpm_sample.1} parent=11 // pred_check
          %p275 = pneg %p92
        $region22: #{ddpm_sample.1} parent=11 // pred_check_branch
          %277 = sbr.rel (%p275) target = $region24
        $region23: #{ddpm_sample.1} parent=11 // pred_region
          %279 = vsyncadd [#allocation6], 0
          %s281 = sshll.u32 %s2, 4
          %s282 = int_to_ptr.vmem [resolvable:$true] %s281
          %284 = dma.vmem_to_smem %s282, 16, [#allocation7], [#allocation6]
        $region24: #{ddpm_sample.1} parent=11 // pred_fallthru
          _
        // Predicated region
        $region25: #{ddpm_sample.1} parent=11 // pred_check
          %p285 = pneg %p113
        $region26: #{ddpm_sample.1} parent=11 // pred_check_branch
          %287 = sbr.rel (%p285) target = $region28
        $region27: #{ddpm_sample.1} parent=11 // pred_region
          %289 = vsyncadd [#allocation9], 0
          %s291 = sshll.u32 %s3, 4
          %s292 = int_to_ptr.vmem [resolvable:$true] %s291
          %294 = dma.vmem_to_smem %s292, 16, [#allocation8], [#allocation9]
        $region28: #{ddpm_sample.1} parent=11 // pred_fallthru
          _
        // Predicated region
        $region29: #{ddpm_sample.1} parent=11 // pred_check
          %p295 = pneg %p134
        $region30: #{ddpm_sample.1} parent=11 // pred_check_branch
          %297 = sbr.rel (%p295) target = $region32
        $region31: #{ddpm_sample.1} parent=11 // pred_region
          %299 = vsyncadd [#allocation9], 0
          %s301 = sshll.u32 %s4, 4
          %s302 = int_to_ptr.vmem [resolvable:$true] %s301
          %304 = dma.vmem_to_smem %s302, 16, [#allocation10], [#allocation9]
        $region32: #{ddpm_sample.1} parent=11 // pred_fallthru
          _
        // Predicated region
        $region33: #{ddpm_sample.1} parent=11 // pred_check
          %p305 = pneg %p160
        $region34: #{ddpm_sample.1} parent=11 // pred_check_branch
          %307 = sbr.rel (%p305) target = $region36
        $region35: #{ddpm_sample.1} parent=11 // pred_region
          %p308 = scmp.lt.s32.totalorder %s26, 0
          %s309 = scalar_select %p308, %s26, 0
          %s310 = smul.addr %s309, 4
          %s311 = scalar_lea.vmem %s5, %s310
        $region36: #{ddpm_sample.1} parent=11 // pred_fallthru
          _
        // Predicated region
        $region37: #{ddpm_sample.1} parent=11 // pred_check
          %p312 = pneg %p186
        $region38: #{ddpm_sample.1} parent=11 // pred_check_branch
          %314 = sbr.rel (%p312) target = $region40
        $region39: #{ddpm_sample.1} parent=11 // pred_region
          %p315 = scmp.lt.s32.totalorder %s26, 0
          %s316 = scalar_select %p315, %s26, 0
          %s317 = smul.addr %s316, 4
          %s318 = scalar_lea.vmem %s6, %s317
        $region40: #{ddpm_sample.1} parent=11 // pred_fallthru
          _
      $region12: #{ddpm_sample.1} parent=5 // pred_fallthru
        _
      %p319 = scmp.lt.s32.totalorder %s17, 8
      // Predicated region
      $region41: #{ddpm_sample.1} parent=5 // pred_check
        %p320 = pneg %p319
      $region42: #{ddpm_sample.1} parent=5 // pred_check_branch
        %322 = sbr.rel (%p320) target = $region44
      $region43: #{ddpm_sample.1} parent=5 // pred_region
        // Predicated region
        $region45: #{ddpm_sample.1} parent=43 // pred_check
          %p323 = pneg %p208
        $region46: #{ddpm_sample.1} parent=43 // pred_check_branch
          %325 = sbr.rel (%p323) target = $region48
        $region47: #{ddpm_sample.1} parent=43 // pred_region
          %p326 = scmp.lt.s32.totalorder %s25, 7
          %s327 = scalar_select %p326, %s25, 7
          %p328 = scmp.lt.s32.totalorder %s24, 0
          %s329 = scalar_select %p328, %s24, 0
          %s330 = smul.addr %s327, 4
          %s331 = sadd.s32 %s329, %s330
          %s332 = smul.addr %s331, 4
          %s333 = scalar_lea.vmem %s7, %s332
        $region48: #{ddpm_sample.1} parent=43 // pred_fallthru
          _
      $region44: #{ddpm_sample.1} parent=5 // pred_fallthru
        _
      %p334 = scmp.le.s32.totalorder 1, %s17
      %p335 = scmp.lt.s32.totalorder %s17, 9
      %p336 = pnand %p334, %p335
      %p337 = pneg %p336
      // Predicated region
      $region49: #{ddpm_sample.1} parent=5 // pred_check
        _
      $region50: #{ddpm_sample.1} parent=5 // pred_check_branch
        %339 = sbr.rel (%p336) target = $region52
      $region51: #{ddpm_sample.1} parent=5 // pred_region
        %s340 = ssub.s32 %s17, 1
        // Predicated region
        $region53: #{ddpm_sample.1} parent=51 // pred_check
          %p341 = pneg %p50
        $region54: #{ddpm_sample.1} parent=51 // pred_check_branch
          %343 = sbr.rel (%p341) target = $region56
        $region55: #{ddpm_sample.1} parent=51 // pred_region
          %345 = dma.done [#allocation4], 16
        $region56: #{ddpm_sample.1} parent=51 // pred_fallthru
          _
        // Predicated region
        $region57: #{ddpm_sample.1} parent=51 // pred_check
          %p346 = pneg %p71
        $region58: #{ddpm_sample.1} parent=51 // pred_check_branch
          %348 = sbr.rel (%p346) target = $region60
        $region59: #{ddpm_sample.1} parent=51 // pred_region
          %350 = dma.done [#allocation6], 16
        $region60: #{ddpm_sample.1} parent=51 // pred_fallthru
          _
        // Predicated region
        $region61: #{ddpm_sample.1} parent=51 // pred_check
          %p351 = pneg %p92
        $region62: #{ddpm_sample.1} parent=51 // pred_check_branch
          %353 = sbr.rel (%p351) target = $region64
        $region63: #{ddpm_sample.1} parent=51 // pred_region
          %355 = dma.done [#allocation6], 16
        $region64: #{ddpm_sample.1} parent=51 // pred_fallthru
          _
        // Predicated region
        $region65: #{ddpm_sample.1} parent=51 // pred_check
          %p356 = pneg %p113
        $region66: #{ddpm_sample.1} parent=51 // pred_check_branch
          %358 = sbr.rel (%p356) target = $region68
        $region67: #{ddpm_sample.1} parent=51 // pred_region
          %360 = dma.done [#allocation9], 16
        $region68: #{ddpm_sample.1} parent=51 // pred_fallthru
          _
        // Predicated region
        $region69: #{ddpm_sample.1} parent=51 // pred_check
          %p361 = pneg %p134
        $region70: #{ddpm_sample.1} parent=51 // pred_check_branch
          %363 = sbr.rel (%p361) target = $region72
        $region71: #{ddpm_sample.1} parent=51 // pred_region
          %365 = dma.done [#allocation9], 16
        $region72: #{ddpm_sample.1} parent=51 // pred_fallthru
          _
        %366 = sfence
        %p367 = pneg %p50
        %p368 = pneg %p47
        %p369 = pneg %p71
        %p370 = pneg %p68
        %p371 = pneg %p92
        %p372 = pneg %p89
        %p373 = pneg %p113
        %p374 = pneg %p110
        %p375 = pneg %p134
        %p376 = pneg %p131
        %p377 = scmp.lt.s32.totalorder %s26, 0
        %s378 = scalar_select %p377, %s26, 0
        %s379 = smul.addr %s378, 4
        %s380 = scalar_lea.vmem %s5, %s379
        %p381 = pneg %p160
        %p382 = pneg %p157
        %p383 = scmp.lt.s32.totalorder %s26, 0
        %s384 = scalar_select %p383, %s26, 0
        %s385 = smul.addr %s384, 4
        %s386 = scalar_lea.vmem %s6, %s385
        %p387 = pneg %p186
        %p388 = pneg %p183
        %p389 = scmp.lt.s32.totalorder %s27, 7
        %s390 = scalar_select %p389, %s27, 7
        %p391 = scmp.lt.s32.totalorder %s26, 0
        %s392 = scalar_select %p391, %s26, 0
        %s393 = smul.addr %s390, 4
        %s394 = sadd.s32 %s392, %s393
        %s395 = smul.addr %s394, 4
        %s396 = scalar_lea.vmem %s7, %s395
        %p397 = pneg %p214
        %p398 = pneg %p211
        %p399 = pneg %p240
        %p400 = pneg %p237
        %p401 = scmp.lt.s32.totalorder %s26, 0
        %s402 = scalar_select %p401, %s26, 0
        %s403 = smul.addr %s402, 4
        %s404 = scalar_lea.vmem %s8, %s403
        %p405 = scmp.lt.s32.totalorder %s26, 0
        %s406 = scalar_select %p405, %s26, 0
        %s407 = smul.addr %s406, 4
        %s408 = scalar_lea.vmem %s5, %s407
        %p409 = scmp.lt.s32.totalorder %s26, 0
        %s410 = scalar_select %p409, %s26, 0
        %s411 = smul.addr %s410, 4
        %s412 = scalar_lea.vmem %s6, %s411
        %p413 = scmp.lt.s32.totalorder %s27, 7
        %s414 = scalar_select %p413, %s27, 7
        %p415 = scmp.lt.s32.totalorder %s26, 0
        %s416 = scalar_select %p415, %s26, 0
        %s417 = smul.addr %s414, 4
        %s418 = sadd.s32 %s416, %s417
        %s419 = smul.addr %s418, 4
        %s420 = scalar_lea.vmem %s7, %s419
        %p421 = scmp.lt.s32.totalorder %s26, 0
        %s422 = scalar_select %p421, %s26, 0
        %s423 = smul.addr %s422, 4
        %s424 = scalar_lea.vmem %s8, %s423
        %s425 = ssub.s32 7, %s27
        %p426 = scmp.eq.s32.totalorder %s27, 0
        // Predicated region
        $region73: #{ddpm_sample.1} parent=51 // pred_check
          %p427 = pneg %p426
        $region74: #{ddpm_sample.1} parent=51 // pred_check_branch
          %429 = sbr.rel (%p427) target = $region76
        $region75: #{ddpm_sample.1} parent=51 // pred_region
          %v430 = vld [vmem:[%s412] sm:$0xf]
          %v431 = vld [vmem:[%s412 + $0x4] sm:$0xf]
          %v432 = vld [vmem:[%s412 + $0x8] sm:$0xf]
          %v433 = vld [vmem:[%s412 + $0xc] sm:$0xf]
          %434 = vst [vmem:[%s424] sm:$0xf] %v430
          %435 = vst [vmem:[%s424 + $0x4] sm:$0xf] %v431
          %436 = vst [vmem:[%s424 + $0x8] sm:$0xf] %v432
          %437 = vst [vmem:[%s424 + $0xc] sm:$0xf] %v433
          %s438 = sld [smem:[#allocation10]]
          %v439 = vld [vmem:[%s408] sm:$0xf]
          %v440 = vstv %s438
          %v441 = vmul.f32 %v440, %v439
          %s442 = sld [smem:[#allocation10 + $0x4]]
          %s443 = scalar_lea.vmem %s408, 4
          %v444 = vld [vmem:[%s443] sm:$0xf]
          %v445 = vstv %s442
          %v446 = vmul.f32 %v445, %v444
          %v447 = vadd.f32 %v441, %v446
          %s448 = sld [smem:[#allocation10 + $0x8]]
          %s449 = scalar_lea.vmem %s408, 8
          %v450 = vld [vmem:[%s449] sm:$0xf]
          %v451 = vstv %s448
          %v452 = vmul.f32 %v451, %v450
          %v453 = vadd.f32 %v447, %v452
          %s454 = sld [smem:[#allocation10 + $0xc]]
          %s455 = scalar_lea.vmem %s408, 12
          %v456 = vld [vmem:[%s455] sm:$0xf]
          %v457 = vstv %s454
          %v458 = vmul.f32 %v457, %v456
          %v459 = vadd.f32 %v453, %v458
          %460 = vst [vmem:[#allocation2] sm:$0xf] %v459
          %s461 = sld [smem:[#allocation10 + $0x1]]
          %v462 = vld [vmem:[%s408] sm:$0xf]
          %v463 = vstv %s461
          %v464 = vmul.f32 %v463, %v462
          %s465 = sld [smem:[#allocation10 + $0x5]]
          %v466 = vld [vmem:[%s443] sm:$0xf]
          %v467 = vstv %s465
          %v468 = vmul.f32 %v467, %v466
          %v469 = vadd.f32 %v464, %v468
          %s470 = sld [smem:[#allocation10 + $0x9]]
          %v471 = vld [vmem:[%s449] sm:$0xf]
          %v472 = vstv %s470
          %v473 = vmul.f32 %v472, %v471
          %v474 = vadd.f32 %v469, %v473
          %s475 = sld [smem:[#allocation10 + $0xd]]
          %v476 = vld [vmem:[%s455] sm:$0xf]
          %v477 = vstv %s475
          %v478 = vmul.f32 %v477, %v476
          %v479 = vadd.f32 %v474, %v478
          %s480 = scalar_lea.vmem [#allocation2], 4
          %481 = vst [vmem:[%s480] sm:$0xf] %v479
          %s482 = sld [smem:[#allocation10 + $0x2]]
          %v483 = vld [vmem:[%s408] sm:$0xf]
          %v484 = vstv %s482
          %v485 = vmul.f32 %v484, %v483
          %s486 = sld [smem:[#allocation10 + $0x6]]
          %v487 = vld [vmem:[%s443] sm:$0xf]
          %v488 = vstv %s486
          %v489 = vmul.f32 %v488, %v487
          %v490 = vadd.f32 %v485, %v489
          %s491 = sld [smem:[#allocation10 + $0xa]]
          %v492 = vld [vmem:[%s449] sm:$0xf]
          %v493 = vstv %s491
          %v494 = vmul.f32 %v493, %v492
          %v495 = vadd.f32 %v490, %v494
          %s496 = sld [smem:[#allocation10 + $0xe]]
          %v497 = vld [vmem:[%s455] sm:$0xf]
          %v498 = vstv %s496
          %v499 = vmul.f32 %v498, %v497
          %v500 = vadd.f32 %v495, %v499
          %s501 = scalar_lea.vmem [#allocation2], 8
          %502 = vst [vmem:[%s501] sm:$0xf] %v500
          %s503 = sld [smem:[#allocation10 + $0x3]]
          %v504 = vld [vmem:[%s408] sm:$0xf]
          %v505 = vstv %s503
          %v506 = vmul.f32 %v505, %v504
          %s507 = sld [smem:[#allocation10 + $0x7]]
          %v508 = vld [vmem:[%s443] sm:$0xf]
          %v509 = vstv %s507
          %v510 = vmul.f32 %v509, %v508
          %v511 = vadd.f32 %v506, %v510
          %s512 = sld [smem:[#allocation10 + $0xb]]
          %v513 = vld [vmem:[%s449] sm:$0xf]
          %v514 = vstv %s512
          %v515 = vmul.f32 %v514, %v513
          %v516 = vadd.f32 %v511, %v515
          %s517 = sld [smem:[#allocation10 + $0xf]]
          %v518 = vld [vmem:[%s455] sm:$0xf]
          %v519 = vstv %s517
          %v520 = vmul.f32 %v519, %v518
          %v521 = vadd.f32 %v516, %v520
          %s522 = scalar_lea.vmem [#allocation2], 12
          %523 = vst [vmem:[%s522] sm:$0xf] %v521
        $region76: #{ddpm_sample.1} parent=51 // pred_fallthru
          _
        %v524 = vld [vmem:[%s424] sm:$0xf]
        %s525 = scalar_lea.vmem %s424, 4
        %v526 = vld [vmem:[%s525] sm:$0xf]
        %s527 = scalar_lea.vmem %s424, 8
        %v528 = vld [vmem:[%s527] sm:$0xf]
        %s529 = scalar_lea.vmem %s424, 12
        %v530 = vld [vmem:[%s529] sm:$0xf]
        %s531 = sld [smem:[#allocation5 + %s425]]
        %s532 = sld [smem:[#allocation8 + %s425]]
        %s533 = smul.u32 %s425, 16
        %s534 = sld [smem:[#allocation3 + %s533]]
        %v535 = vstv %s534
        %v536 = vmul.f32 %v535, %v524
        %s537 = smul.u32 %s425, 4
        %s538 = sadd.s32 %s537, 1
        %s539 = smul.u32 %s538, 4
        %s540 = sld [smem:[#allocation3 + %s539]]
        %v541 = vstv %s540
        %v542 = vmul.f32 %v541, %v526
        %v543 = vadd.f32 %v536, %v542
        %s544 = sadd.s32 %s537, 2
        %s545 = smul.u32 %s544, 4
        %s546 = sld [smem:[#allocation3 + %s545]]
        %v547 = vstv %s546
        %v548 = vmul.f32 %v547, %v528
        %v549 = vadd.f32 %v543, %v548
        %s550 = sadd.s32 %s537, 3
        %s551 = smul.u32 %s550, 4
        %s552 = sld [smem:[#allocation3 + %s551]]
        %v553 = vstv %s552
        %v554 = vmul.f32 %v553, %v530
        %v555 = vadd.f32 %v549, %v554
        %v556 = vld [vmem:[#allocation2] sm:$0xf]
        %v557 = vstv %s531
        %v558 = vmul.f32 %v557, %v556
        %v559 = vadd.f32 %v555, %v558
        %s560 = sld [smem:[#allocation7 + %s537]]
        %v561 = vstv %s560
        %v562 = vadd.f32 %v559, %v561
        %s563 = sadd.s32 %s533, 1
        %s564 = sld [smem:[#allocation3 + %s563]]
        %v565 = vstv %s564
        %v566 = vmul.f32 %v565, %v524
        %s567 = sadd.s32 %s539, 1
        %s568 = sld [smem:[#allocation3 + %s567]]
        %v569 = vstv %s568
        %v570 = vmul.f32 %v569, %v526
        %v571 = vadd.f32 %v566, %v570
        %s572 = sadd.s32 %s545, 1
        %s573 = sld [smem:[#allocation3 + %s572]]
        %v574 = vstv %s573
        %v575 = vmul.f32 %v574, %v528
        %v576 = vadd.f32 %v571, %v575
        %s577 = sadd.s32 %s551, 1
        %s578 = sld [smem:[#allocation3 + %s577]]
        %v579 = vstv %s578
        %v580 = vmul.f32 %v579, %v530
        %v581 = vadd.f32 %v576, %v580
        %s582 = scalar_lea.vmem [#allocation2], 4
        %v583 = vld [vmem:[%s582] sm:$0xf]
        %v584 = vmul.f32 %v557, %v583
        %v585 = vadd.f32 %v581, %v584
        %s586 = sld [smem:[#allocation7 + %s538]]
        %v587 = vstv %s586
        %v588 = vadd.f32 %v585, %v587
        %s589 = sadd.s32 %s533, 2
        %s590 = sld [smem:[#allocation3 + %s589]]
        %v591 = vstv %s590
        %v592 = vmul.f32 %v591, %v524
        %s593 = sadd.s32 %s539, 2
        %s594 = sld [smem:[#allocation3 + %s593]]
        %v595 = vstv %s594
        %v596 = vmul.f32 %v595, %v526
        %v597 = vadd.f32 %v592, %v596
        %s598 = sadd.s32 %s545, 2
        %s599 = sld [smem:[#allocation3 + %s598]]
        %v600 = vstv %s599
        %v601 = vmul.f32 %v600, %v528
        %v602 = vadd.f32 %v597, %v601
        %s603 = sadd.s32 %s551, 2
        %s604 = sld [smem:[#allocation3 + %s603]]
        %v605 = vstv %s604
        %v606 = vmul.f32 %v605, %v530
        %v607 = vadd.f32 %v602, %v606
        %s608 = scalar_lea.vmem [#allocation2], 8
        %v609 = vld [vmem:[%s608] sm:$0xf]
        %v610 = vmul.f32 %v557, %v609
        %v611 = vadd.f32 %v607, %v610
        %s612 = sld [smem:[#allocation7 + %s544]]
        %v613 = vstv %s612
        %v614 = vadd.f32 %v611, %v613
        %s615 = sadd.s32 %s533, 3
        %s616 = sld [smem:[#allocation3 + %s615]]
        %v617 = vstv %s616
        %v618 = vmul.f32 %v617, %v524
        %s619 = sadd.s32 %s539, 3
        %s620 = sld [smem:[#allocation3 + %s619]]
        %v621 = vstv %s620
        %v622 = vmul.f32 %v621, %v526
        %v623 = vadd.f32 %v618, %v622
        %s624 = sadd.s32 %s545, 3
        %s625 = sld [smem:[#allocation3 + %s624]]
        %v626 = vstv %s625
        %v627 = vmul.f32 %v626, %v528
        %v628 = vadd.f32 %v623, %v627
        %s629 = sadd.s32 %s551, 3
        %s630 = sld [smem:[#allocation3 + %s629]]
        %v631 = vstv %s630
        %v632 = vmul.f32 %v631, %v530
        %v633 = vadd.f32 %v628, %v632
        %s634 = scalar_lea.vmem [#allocation2], 12
        %v635 = vld [vmem:[%s634] sm:$0xf]
        %v636 = vmul.f32 %v557, %v635
        %v637 = vadd.f32 %v633, %v636
        %s638 = sld [smem:[#allocation7 + %s550]]
        %v639 = vstv %s638
        %v640 = vadd.f32 %v637, %v639
        %p641 = scmp.lt.s32.totalorder %s27, 7
        // Predicated region
        $region77: #{ddpm_sample.1} parent=51 // pred_check
          %p642 = pneg %p641
        $region78: #{ddpm_sample.1} parent=51 // pred_check_branch
          %644 = sbr.rel (%p642) target = $region80
        $region79: #{ddpm_sample.1} parent=51 // pred_region
          %v645 = vld [vmem:[%s420] sm:$0xf]
          %v646 = vstv %s532
          %v647 = vmul.f32 %v646, %v645
          %v648 = vadd.f32 %v562, %v647
          %649 = vst [vmem:[%s424] sm:$0xf] %v648
          %s650 = scalar_lea.vmem %s420, 4
          %v651 = vld [vmem:[%s650] sm:$0xf]
          %v652 = vmul.f32 %v646, %v651
          %v653 = vadd.f32 %v588, %v652
          %654 = vst [vmem:[%s525] sm:$0xf] %v653
          %s655 = scalar_lea.vmem %s420, 8
          %v656 = vld [vmem:[%s655] sm:$0xf]
          %v657 = vmul.f32 %v646, %v656
          %v658 = vadd.f32 %v614, %v657
          %659 = vst [vmem:[%s527] sm:$0xf] %v658
          %s660 = scalar_lea.vmem %s420, 12
          %v661 = vld [vmem:[%s660] sm:$0xf]
          %v662 = vmul.f32 %v646, %v661
          %v663 = vadd.f32 %v640, %v662
          %664 = vst [vmem:[%s529] sm:$0xf] %v663
        $region80: #{ddpm_sample.1} parent=51 // pred_fallthru
          _
        %p665 = scmp.eq.s32.totalorder %s27, 7
        // Predicated region
        $region81: #{ddpm_sample.1} parent=51 // pred_check
          %p666 = pneg %p665
        $region82: #{ddpm_sample.1} parent=51 // pred_check_branch
          %668 = sbr.rel (%p666) target = $region84
        $region83: #{ddpm_sample.1} parent=51 // pred_region
          %v669 = vmax.f32 %v562, -1.0
          %v670 = vmin.f32 %v669, 1.0
          %671 = vst [vmem:[%s424] sm:$0xf] %v670
          %v672 = vmax.f32 %v588, -1.0
          %v673 = vmin.f32 %v672, 1.0
          %674 = vst [vmem:[%s525] sm:$0xf] %v673
          %v675 = vmax.f32 %v614, -1.0
          %v676 = vmin.f32 %v675, 1.0
          %677 = vst [vmem:[%s527] sm:$0xf] %v676
          %v678 = vmax.f32 %v640, -1.0
          %v679 = vmin.f32 %v678, 1.0
          %680 = vst [vmem:[%s529] sm:$0xf] %v679
        $region84: #{ddpm_sample.1} parent=51 // pred_fallthru
          _
        %p681 = scmp.lt.s32.totalorder %s26, 0
        %s682 = scalar_select %p681, %s26, 0
        %s683 = smul.addr %s682, 4
        %s684 = scalar_lea.vmem %s8, %s683
        // Predicated region
        $region85: #{ddpm_sample.1} parent=51 // pred_check
          %p685 = pneg %p237
        $region86: #{ddpm_sample.1} parent=51 // pred_check_branch
          %687 = sbr.rel (%p685) target = $region88
        $region87: #{ddpm_sample.1} parent=51 // pred_region
          _
        $region88: #{ddpm_sample.1} parent=51 // pred_fallthru
          _
        // Predicated region
        $region89: #{ddpm_sample.1} parent=51 // pred_check
          %p688 = pneg %p237
        $region90: #{ddpm_sample.1} parent=51 // pred_check_branch
          %690 = sbr.rel (%p688) target = $region92
        $region91: #{ddpm_sample.1} parent=51 // pred_region
          %p691 = scmp.lt.s32.totalorder %s26, 0
          %s692 = scalar_select %p691, %s26, 0
          %s693 = smul.addr %s692, 4
          %s694 = scalar_lea.vmem %s8, %s693
        $region92: #{ddpm_sample.1} parent=51 // pred_fallthru
          _
      $region52: #{ddpm_sample.1} parent=5 // pred_fallthru
        _
      %p695 = scmp.le.s32.totalorder 2, %s17
      // Predicated region
      $region93: #{ddpm_sample.1} parent=5 // pred_check
        %p696 = pneg %p695
      $region94: #{ddpm_sample.1} parent=5 // pred_check_branch
        %698 = sbr.rel (%p696) target = $region96
      $region95: #{ddpm_sample.1} parent=5 // pred_region
        %s699 = ssub.s32 %s17, 2
      $region96: #{ddpm_sample.1} parent=5 // pred_fallthru
        _
    $region6: #{ddpm_sample.1} parent=1 // loop_footer
      %s21 = sadd.s32 1, %s17
    $region7: #{ddpm_sample.1} parent=1 // loop_footer_branch
      %16 = sbr.rel target = $region3
    $region8: #{ddpm_sample.1} parent=1 // loop_exit
      _
    %700 = vsyncpa [#allocation4], 1
    %s701 = scalar_lea.sflag [#allocation4], 1
    %702 = vsyncpa %s701, 1
    %703 = vsyncpa [#allocation6], 1
    %704 = vsyncpa [#allocation9], 1

</llo_original>
